<compile_context>
chip_gen: v5e
topology: v5e:2x2
jax: 0.10.0
libtpu: 0.0.40
codegen_flags: <defaults>
</compile_context>

<pallas_src>
import math
import functools

import jax
import jax.numpy as jnp
from jax import lax
from jax.experimental import pallas as pl
from jax.experimental.pallas import tpu as pltpu


# ----------------------------------------------------------------------------
# Fused kernel: biLSTM recurrence + batched attention + state MLP + l3.
# All arrays live whole in VMEM (tiny shapes), no grid.
# ----------------------------------------------------------------------------
def actor_kernel(histpair_ref, win_ref, bin_ref, wrec_ref, state_ref,
                 wla_ref, bla_ref, w1_ref, b1_ref, w2_ref, b2_ref, w3_ref, b3_ref,
                 action_ref, scored_ref, hstage_ref, hrev_ref,
                 *, T, B, H, max_action):
    f32 = jnp.float32
    bf16 = jnp.bfloat16
    H2 = 2 * H

    # --- 1) hoisted input projection for BOTH directions / time alignments ----
    # Row t*B+b of histpair is [x_t | x_{T-1-t}]; w_in (2I, 8H) routes its first I rows
    # only into fwd gate columns and its last I rows only into bwd gate columns, so
    # gates_in is already time-aligned per direction (no per-step select needed).
    gates_in = (jnp.dot(histpair_ref[...], win_ref[...],
                        preferred_element_type=f32) + bin_ref[...])        # (T*B, 8H)
    wrec = wrec_ref[...]                                                    # (2H,8H) bf16

    h = jnp.zeros((B, H2), f32)      # [h_fwd | h_bwd]
    c = jnp.zeros((B, H2), f32)      # [c_fwd | c_bwd]

    # --- 2) fused fwd/bwd recurrence, fully unrolled (T static & small) -------
    # One bf16 MXU matmul per step; gate math in f32 on VPU/EUP.  The full 128-lane h
    # is staged into VMEM twice per step (fwd-aligned and bwd-aligned row blocks) so no
    # half-width extracts stay live across the unrolled loop.
    for s in range(T):
        g = gates_in[s * B:(s + 1) * B, :] + jnp.dot(
            h.astype(bf16), wrec, preferred_element_type=f32)              # (B, 8H)
        i_g = jax.nn.sigmoid(g[:, 0 * H2:1 * H2])   # [i_f | i_b]  full-vreg lane slices
        f_g = jax.nn.sigmoid(g[:, 1 * H2:2 * H2])   # [f_f | f_b]
        c_g = jnp.tanh(g[:, 2 * H2:3 * H2])         # [g_f | g_b]
        o_g = jax.nn.sigmoid(g[:, 3 * H2:4 * H2])   # [o_f | o_b]
        c = f_g * c + i_g * c_g
        h = o_g * jnp.tanh(c)
        hstage_ref[s * B:(s + 1) * B, :] = h              # fwd half correct at time s
        hrev_ref[(T - 1 - s) * B:(T - s) * B, :] = h      # bwd half correct at time T-1-s

    k = h    # final hidden = torch.cat(ht[0], ht[1]) = [h_fwd(T-1) | h_bwd(0)]  (B,2H)

    # --- 3) batched attention (la / dot-with-k / time-softmax) + scored_x1 ----
    # x1 row t*B+b = [h_fwd(t,b) | h_bwd(t,b)] built with a single full-vreg lane select.
    lane = lax.broadcasted_iota(jnp.int32, (T * B, H2), 1)
    x1 = jnp.where(lane < H, hstage_ref[...], hrev_ref[...])               # (T*B, 2H)
    u = jnp.tanh(jnp.dot(x1.astype(bf16), wla_ref[...],
                         preferred_element_type=f32) + bla_ref[...])       # (T*B, 2H)
    k_rep = jnp.concatenate([k] * T, axis=0)          # one-time broadcast of k over T
    # torch: d = u.shape[0] == batch size
    att = jnp.sum(u * k_rep, axis=-1, keepdims=True) * (1.0 / math.sqrt(B))  # (T*B, 1)
    att = jnp.broadcast_to(att, (T * B, H2))          # lane-broadcast -> full-vreg rolls
    # Stable softmax over the time group of each row (rows r with equal r % B), computed
    # in row layout with sublane rolls -> no reshape/transpose, result stays row-aligned.
    m = att
    for sh in range(1, T):
        m = jnp.maximum(m, pltpu.roll(att, shift=sh * B, axis=0))          # group max
    e = jnp.exp(att - m)
    se = e
    for sh in range(1, T):
        se = se + pltpu.roll(e, shift=sh * B, axis=0)                      # group sum
    att_score = e * pl.reciprocal(se, approx=True)
    scored_ref[...] = x1 * att_score                  # single unmasked bulk store

    # --- 4) state branch: relu(l1) -> relu(l2) -> tanh(l3), batched over B ----
    # Only the last row of x3 = cat([scored_x1, x2], 1) feeds the returned action,
    # and that row is exactly the state-branch x2.
    h1 = jnp.maximum(jnp.dot(state_ref[...], w1_ref[...],
                             preferred_element_type=f32) + b1_ref[...], 0.0)
    h2 = jnp.maximum(jnp.dot(h1.astype(bf16), w2_ref[...],
                             preferred_element_type=f32) + b2_ref[...], 0.0)
    act = jnp.tanh(jnp.dot(h2.astype(bf16), w3_ref[...],
                           preferred_element_type=f32) + b3_ref[...])      # (B, 128)
    action_ref[...] = max_action * act


# ----------------------------------------------------------------------------
# Parameter init (deterministic, PyTorch-like uniform ranges; l3 uses init_w)
# ----------------------------------------------------------------------------
def init_params(key, n_states, n_actions, lstm_input, hidden, init_w=0.003):
    keys = jax.random.split(key, 16)

    def unif(k, shape, bound):
        return jax.random.uniform(k, shape, jnp.float32, -bound, bound)

    H = hidden
    lb = 1.0 / math.sqrt(H)
    return dict(
        wih_f=unif(keys[0], (4 * H, lstm_input), lb),
        whh_f=unif(keys[1], (4 * H, H), lb),
        bih_f=unif(keys[2], (4 * H,), lb),
        bhh_f=unif(keys[3], (4 * H,), lb),
        wih_b=unif(keys[4], (4 * H, lstm_input), lb),
        whh_b=unif(keys[5], (4 * H, H), lb),
        bih_b=unif(keys[6], (4 * H,), lb),
        bhh_b=unif(keys[7], (4 * H,), lb),
        wla=unif(keys[8], (2 * H, 2 * H), 1.0 / math.sqrt(2 * H)),
        bla=unif(keys[9], (2 * H,), 1.0 / math.sqrt(2 * H)),
        w1=unif(keys[10], (128, n_states), 1.0 / math.sqrt(n_states)),
        b1=unif(keys[11], (128,), 1.0 / math.sqrt(n_states)),
        w2=unif(keys[12], (128, 128), 1.0 / math.sqrt(128)),
        b2=unif(keys[13], (128,), 1.0 / math.sqrt(128)),
        w3=unif(keys[14], (n_actions, 128), init_w),
        b3=unif(keys[15], (n_actions,), init_w),
    )


# ----------------------------------------------------------------------------
# Weight re-layout (wrapper-side, plain XLA):
#   * gate columns interleaved [i_f|i_b|f_f|f_b|g_f|g_b|o_f|o_b] (every slice = 128 lanes)
#   * input weight (2I, 8H): rows 0:I -> fwd columns only; rows I:2I -> bwd columns only
#   * recurrent weight (2H, 8H): rows 0:H (h_fwd) -> fwd cols; rows H:2H (h_bwd) -> bwd cols
# MXU operands are cast to bf16 (accumulation stays f32 inside the kernel).
# ----------------------------------------------------------------------------
def _pack_lstm_weights(params, H):
    I = params["wih_f"].shape[1]
    wf = params["wih_f"].T.reshape(I, 4, H)
    wb = params["wih_b"].T.reshape(I, 4, H)
    z = jnp.zeros_like(wf)
    w_in = jnp.concatenate(
        [jnp.stack([wf, z], axis=2).reshape(I, 8 * H),
         jnp.stack([z, wb], axis=2).reshape(I, 8 * H)], axis=0)            # (2I, 8H)

    bf = (params["bih_f"] + params["bhh_f"]).reshape(4, H)
    bb = (params["bih_b"] + params["bhh_b"]).reshape(4, H)
    b_in = jnp.stack([bf, bb], axis=1).reshape(1, 8 * H)                   # (1, 8H)

    rf = params["whh_f"].T.reshape(H, 4, H)
    rb = params["whh_b"].T.reshape(H, 4, H)
    zr = jnp.zeros_like(rf)
    w_rec = jnp.concatenate(
        [jnp.stack([rf, zr], axis=2).reshape(H, 8 * H),
         jnp.stack([zr, rb], axis=2).reshape(H, 8 * H)], axis=0)           # (2H, 8H)
    return (w_in.astype(jnp.bfloat16), b_in.astype(jnp.float32),
            w_rec.astype(jnp.bfloat16))


# ----------------------------------------------------------------------------
# Wrapper: layout plumbing in plain JAX, all compute in one Pallas kernel.
# ----------------------------------------------------------------------------
def actor_forward(history, state, params, max_action):
    B, T, I = history.shape
    H = params["whh_f"].shape[1]
    A = params["w3"].shape[0]
    assert 2 * H == 128, "model requires bidirectional output width 2H == 128"
    A_PAD = 128   # pad l3 output to a full lane tile (unmasked store); sliced back below

    # rows t*B+b = [x_t | x_{T-1-t}]  (time-major, paired fwd/bwd inputs)
    xs = jnp.transpose(history, (1, 0, 2)).astype(jnp.float32)             # (T, B, I)
    hist_pair = jnp.concatenate([xs, xs[::-1]], axis=-1).reshape(T * B, 2 * I)
    hist_pair = hist_pair.astype(jnp.bfloat16)

    w_in, b_in, w_rec = _pack_lstm_weights(params, H)

    wla = params["wla"].T.astype(jnp.bfloat16)
    bla = params["bla"][None, :].astype(jnp.float32)
    w1 = params["w1"].T.astype(jnp.bfloat16)
    b1 = params["b1"][None, :].astype(jnp.float32)
    w2 = params["w2"].T.astype(jnp.bfloat16)
    b2 = params["b2"][None, :].astype(jnp.float32)
    w3p = jnp.zeros((128, A_PAD), jnp.float32).at[:, :A].set(params["w3"].T)
    w3p = w3p.astype(jnp.bfloat16)
    b3p = jnp.zeros((1, A_PAD), jnp.float32).at[:, :A].set(params["b3"][None, :])

    vm = pl.BlockSpec(memory_space=pltpu.MemorySpace.VMEM)
    kern = functools.partial(actor_kernel, T=T, B=B, H=H, max_action=float(max_action))
    action_pad, scored2d = pl.pallas_call(
        kern,
        out_shape=(jax.ShapeDtypeStruct((B, A_PAD), jnp.float32),
                   jax.ShapeDtypeStruct((T * B, 2 * H), jnp.float32)),
        in_specs=[vm] * 13,
        out_specs=(vm, vm),
        scratch_shapes=[pltpu.VMEM((T * B, 2 * H), jnp.float32),   # fwd-time-aligned h
                        pltpu.VMEM((T * B, 2 * H), jnp.float32)],  # bwd-time-aligned h
    )(hist_pair, w_in, b_in, w_rec, state.astype(jnp.bfloat16),
      wla, bla, w1, b1, w2, b2, w3p, b3p)

    # layout plumbing only: lane-dense (T*B, 2H) slab -> (B, T, 2H)
    scored = scored2d.reshape(T, B, 2 * H).transpose(1, 0, 2)
    return action_pad[:, :A], scored


# ----------------------------------------------------------------------------
# Pure-JAX f32 reference mirroring the torch forward (sanity check).
# ----------------------------------------------------------------------------
def actor_reference(history, state, params, max_action):
    B, T, I = history.shape
    H = params["whh_f"].shape[1]

    def lstm_dir(wih, whh, bih, bhh, xs):  # xs: (T, B, I)
        def step(carry, x_t):
            h, c = carry
            g = x_t @ wih.T + bih + h @ whh.T + bhh
            i = jax.nn.sigmoid(g[:, :H])
            f = jax.nn.sigmoid(g[:, H:2 * H])
            gg = jnp.tanh(g[:, 2 * H:3 * H])
            o = jax.nn.sigmoid(g[:, 3 * H:])
            c = f * c + i * gg
            h = o * jnp.tanh(c)
            return (h, c), h
        (hT, _), hs = lax.scan(step, (jnp.zeros((B, H)), jnp.zeros((B, H))), xs)
        return hT, hs

    xs = jnp.transpose(history, (1, 0, 2))
    hf, hs_f = lstm_dir(params["wih_f"], params["whh_f"], params["bih_f"], params["bhh_f"], xs)
    hb, hs_b = lstm_dir(params["wih_b"], params["whh_b"], params["bih_b"], params["bhh_b"], xs[::-1])
    hs_b = hs_b[::-1]
    x1 = jnp.transpose(jnp.concatenate([hs_f, hs_b], axis=-1), (1, 0, 2))    # (B, T, 2H)
    kk = jnp.concatenate([hf, hb], axis=-1)[:, :, None]                      # (B, 2H, 1)
    u = jnp.tanh(x1 @ params["wla"].T + params["bla"])
    att = jnp.einsum('btd,bdo->bto', u, kk) / math.sqrt(B)
    att_score = jax.nn.softmax(att, axis=1)
    scored = x1 * att_score
    st = state[:, None, :]
    x2 = jax.nn.relu(st @ params["w1"].T + params["b1"])
    x2 = jax.nn.relu(x2 @ params["w2"].T + params["b2"])
    x3 = jnp.concatenate([scored, x2], axis=1)
    act = jnp.tanh(x3 @ params["w3"].T + params["b3"])
    return max_action * act[:, -1, :], scored


if __name__ == "__main__":
    B, T = 2, 8
    n_states, n_actions = 16, 4
    hidden = 64                 # bidirectional => 2*hidden = 128 = MLP width
    lstm_input = n_states
    max_action = 2.0

    key = jax.random.PRNGKey(0)
    pkey, hkey, skey = jax.random.split(key, 3)
    params = init_params(pkey, n_states, n_actions, lstm_input, hidden)
    history = jax.random.normal(hkey, (B, T, lstm_input), jnp.float32)
    state = jax.random.normal(skey, (B, n_states), jnp.float32)

    action, scored = actor_forward(history, state, params, max_action)
    jax.block_until_ready((action, scored))

    ref_action, ref_scored = actor_reference(history, state, params, max_action)
    assert action.shape == (B, n_actions)
    assert scored.shape == (B, T, 2 * hidden)
    # Tolerance accounts for bf16 MXU operands (f32 accumulation) and the approximate
    # EUP reciprocal in the softmax; the f32 reference is exact.
    assert jnp.allclose(action, ref_action, rtol=2e-2, atol=2e-2)
    assert jnp.allclose(scored, ref_scored, rtol=2e-2, atol=2e-2)

    print("KERNEL_OK")
</pallas_src>

<mosaic_0001>
module attributes {stable_mosaic.version = 11 : i64} {
  func.func @actor_kernel(%arg0: memref<16x32xbf16, #tpu.memory_space<vmem>>, %arg1: memref<32x512xbf16, #tpu.memory_space<vmem>>, %arg2: memref<1x512xf32, #tpu.memory_space<vmem>>, %arg3: memref<128x512xbf16, #tpu.memory_space<vmem>>, %arg4: memref<2x16xbf16, #tpu.memory_space<vmem>>, %arg5: memref<128x128xbf16, #tpu.memory_space<vmem>>, %arg6: memref<1x128xf32, #tpu.memory_space<vmem>>, %arg7: memref<16x128xbf16, #tpu.memory_space<vmem>>, %arg8: memref<1x128xf32, #tpu.memory_space<vmem>>, %arg9: memref<128x128xbf16, #tpu.memory_space<vmem>>, %arg10: memref<1x128xf32, #tpu.memory_space<vmem>>, %arg11: memref<128x128xbf16, #tpu.memory_space<vmem>>, %arg12: memref<1x128xf32, #tpu.memory_space<vmem>>, %arg13: memref<2x128xf32, #tpu.memory_space<vmem>>, %arg14: memref<16x128xf32, #tpu.memory_space<vmem>>, %arg15: memref<16x128xf32, #tpu.memory_space<vmem>>, %arg16: memref<16x128xf32, #tpu.memory_space<vmem>>) attributes {dimension_semantics = [], scalar_prefetch = 0 : i64, scratch_operands = 2 : i64, tpu.core_type = #tpu.core_type<tc>} {
    %c0 = arith.constant 0 : index
    %c0_0 = arith.constant 0 : index
    %0 = vector.load %arg0[%c0, %c0_0] : memref<16x32xbf16, #tpu.memory_space<vmem>>, vector<16x32xbf16>
    %c0_1 = arith.constant 0 : index
    %c0_2 = arith.constant 0 : index
    %1 = vector.load %arg1[%c0_1, %c0_2] : memref<32x512xbf16, #tpu.memory_space<vmem>>, vector<32x512xbf16>
    %cst = arith.constant dense<0.000000e+00> : vector<16x512xf32>
    %2 = tpu.matmul %0, %1, %cst {dimension_numbers = #tpu.dot_dimension_numbers<[1], [0], [0], [1], [0, 0, 1, 1], [], []>} : vector<16x32xbf16>, vector<32x512xbf16>, vector<16x512xf32> -> vector<16x512xf32>
    %c0_3 = arith.constant 0 : index
    %c0_4 = arith.constant 0 : index
    %3 = vector.load %arg2[%c0_3, %c0_4] : memref<1x512xf32, #tpu.memory_space<vmem>>, vector<1x512xf32>
    %4 = vector.broadcast %3 : vector<1x512xf32> to vector<16x512xf32>
    %5 = arith.addf %2, %4 : vector<16x512xf32>
    %c0_5 = arith.constant 0 : index
    %c0_6 = arith.constant 0 : index
    %6 = vector.load %arg3[%c0_5, %c0_6] : memref<128x512xbf16, #tpu.memory_space<vmem>>, vector<128x512xbf16>
    %cst_7 = arith.constant 0.000000e+00 : f32
    %7 = vector.broadcast %cst_7 : f32 to vector<2x128xf32>
    %cst_8 = arith.constant 0.000000e+00 : f32
    %8 = vector.broadcast %cst_8 : f32 to vector<2x128xf32>
    %9 = vector.extract_strided_slice %5 {offsets = [0, 0], sizes = [2, 512], strides = [1, 1]} : vector<16x512xf32> to vector<2x512xf32>
    %10 = arith.truncf %7 : vector<2x128xf32> to vector<2x128xbf16>
    %cst_9 = arith.constant dense<0.000000e+00> : vector<2x512xf32>
    %11 = tpu.matmul %10, %6, %cst_9 {dimension_numbers = #tpu.dot_dimension_numbers<[1], [0], [0], [1], [0, 0, 1, 1], [], []>} : vector<2x128xbf16>, vector<128x512xbf16>, vector<2x512xf32> -> vector<2x512xf32>
    %12 = arith.addf %9, %11 : vector<2x512xf32>
    %13 = vector.extract_strided_slice %12 {offsets = [0, 0], sizes = [2, 128], strides = [1, 1]} : vector<2x512xf32> to vector<2x128xf32>
    %14 = arith.negf %13 : vector<2x128xf32>
    %15 = math.exp %14 : vector<2x128xf32>
    %cst_10 = arith.constant 1.000000e+00 : f32
    %16 = vector.broadcast %cst_10 : f32 to vector<2x128xf32>
    %17 = arith.addf %16, %15 : vector<2x128xf32>
    %18 = arith.divf %16, %17 : vector<2x128xf32>
    %19 = vector.extract_strided_slice %12 {offsets = [0, 128], sizes = [2, 128], strides = [1, 1]} : vector<2x512xf32> to vector<2x128xf32>
    %20 = arith.negf %19 : vector<2x128xf32>
    %21 = math.exp %20 : vector<2x128xf32>
    %cst_11 = arith.constant 1.000000e+00 : f32
    %22 = vector.broadcast %cst_11 : f32 to vector<2x128xf32>
    %23 = arith.addf %22, %21 : vector<2x128xf32>
    %24 = arith.divf %22, %23 : vector<2x128xf32>
    %25 = vector.extract_strided_slice %12 {offsets = [0, 256], sizes = [2, 128], strides = [1, 1]} : vector<2x512xf32> to vector<2x128xf32>
    %26 = math.tanh %25 : vector<2x128xf32>
    %27 = vector.extract_strided_slice %12 {offsets = [0, 384], sizes = [2, 128], strides = [1, 1]} : vector<2x512xf32> to vector<2x128xf32>
    %28 = arith.negf %27 : vector<2x128xf32>
    %29 = math.exp %28 : vector<2x128xf32>
    %cst_12 = arith.constant 1.000000e+00 : f32
    %30 = vector.broadcast %cst_12 : f32 to vector<2x128xf32>
    %31 = arith.addf %30, %29 : vector<2x128xf32>
    %32 = arith.divf %30, %31 : vector<2x128xf32>
    %33 = arith.mulf %24, %8 : vector<2x128xf32>
    %34 = arith.mulf %18, %26 : vector<2x128xf32>
    %35 = arith.addf %33, %34 : vector<2x128xf32>
    %36 = math.tanh %35 : vector<2x128xf32>
    %37 = arith.mulf %32, %36 : vector<2x128xf32>
    %c0_13 = arith.constant 0 : index
    %c0_14 = arith.constant 0 : index
    %38 = vector.load %arg15[%c0_13, %c0_14] : memref<16x128xf32, #tpu.memory_space<vmem>>, vector<2x128xf32>
    tpu.vector_store %arg15[%c0_13, %c0_14], %37 {strides = array<i32>} : memref<16x128xf32, #tpu.memory_space<vmem>>, vector<2x128xf32>,
    %c14 = arith.constant 14 : index
    %c0_15 = arith.constant 0 : index
    %39 = vector.load %arg16[%c14, %c0_15] : memref<16x128xf32, #tpu.memory_space<vmem>>, vector<2x128xf32>
    tpu.vector_store %arg16[%c14, %c0_15], %37 {strides = array<i32>} : memref<16x128xf32, #tpu.memory_space<vmem>>, vector<2x128xf32>,
    %40 = vector.extract_strided_slice %5 {offsets = [2, 0], sizes = [2, 512], strides = [1, 1]} : vector<16x512xf32> to vector<2x512xf32>
    %41 = arith.truncf %37 : vector<2x128xf32> to vector<2x128xbf16>
    %cst_16 = arith.constant dense<0.000000e+00> : vector<2x512xf32>
    %42 = tpu.matmul %41, %6, %cst_16 {dimension_numbers = #tpu.dot_dimension_numbers<[1], [0], [0], [1], [0, 0, 1, 1], [], []>} : vector<2x128xbf16>, vector<128x512xbf16>, vector<2x512xf32> -> vector<2x512xf32>
    %43 = arith.addf %40, %42 : vector<2x512xf32>
    %44 = vector.extract_strided_slice %43 {offsets = [0, 0], sizes = [2, 128], strides = [1, 1]} : vector<2x512xf32> to vector<2x128xf32>
    %45 = arith.negf %44 : vector<2x128xf32>
    %46 = math.exp %45 : vector<2x128xf32>
    %cst_17 = arith.constant 1.000000e+00 : f32
    %47 = vector.broadcast %cst_17 : f32 to vector<2x128xf32>
    %48 = arith.addf %47, %46 : vector<2x128xf32>
    %49 = arith.divf %47, %48 : vector<2x128xf32>
    %50 = vector.extract_strided_slice %43 {offsets = [0, 128], sizes = [2, 128], strides = [1, 1]} : vector<2x512xf32> to vector<2x128xf32>
    %51 = arith.negf %50 : vector<2x128xf32>
    %52 = math.exp %51 : vector<2x128xf32>
    %cst_18 = arith.constant 1.000000e+00 : f32
    %53 = vector.broadcast %cst_18 : f32 to vector<2x128xf32>
    %54 = arith.addf %53, %52 : vector<2x128xf32>
    %55 = arith.divf %53, %54 : vector<2x128xf32>
    %56 = vector.extract_strided_slice %43 {offsets = [0, 256], sizes = [2, 128], strides = [1, 1]} : vector<2x512xf32> to vector<2x128xf32>
    %57 = math.tanh %56 : vector<2x128xf32>
    %58 = vector.extract_strided_slice %43 {offsets = [0, 384], sizes = [2, 128], strides = [1, 1]} : vector<2x512xf32> to vector<2x128xf32>
    %59 = arith.negf %58 : vector<2x128xf32>
    %60 = math.exp %59 : vector<2x128xf32>
    %cst_19 = arith.constant 1.000000e+00 : f32
    %61 = vector.broadcast %cst_19 : f32 to vector<2x128xf32>
    %62 = arith.addf %61, %60 : vector<2x128xf32>
    %63 = arith.divf %61, %62 : vector<2x128xf32>
    %64 = arith.mulf %55, %35 : vector<2x128xf32>
    %65 = arith.mulf %49, %57 : vector<2x128xf32>
    %66 = arith.addf %64, %65 : vector<2x128xf32>
    %67 = math.tanh %66 : vector<2x128xf32>
    %68 = arith.mulf %63, %67 : vector<2x128xf32>
    %c2 = arith.constant 2 : index
    %c0_20 = arith.constant 0 : index
    %69 = vector.load %arg15[%c2, %c0_20] : memref<16x128xf32, #tpu.memory_space<vmem>>, vector<2x128xf32>
    tpu.vector_store %arg15[%c2, %c0_20], %68 {strides = array<i32>} : memref<16x128xf32, #tpu.memory_space<vmem>>, vector<2x128xf32>,
    %c12 = arith.constant 12 : index
    %c0_21 = arith.constant 0 : index
    %70 = vector.load %arg16[%c12, %c0_21] : memref<16x128xf32, #tpu.memory_space<vmem>>, vector<2x128xf32>
    tpu.vector_store %arg16[%c12, %c0_21], %68 {strides = array<i32>} : memref<16x128xf32, #tpu.memory_space<vmem>>, vector<2x128xf32>,
    %71 = vector.extract_strided_slice %5 {offsets = [4, 0], sizes = [2, 512], strides = [1, 1]} : vector<16x512xf32> to vector<2x512xf32>
    %72 = arith.truncf %68 : vector<2x128xf32> to vector<2x128xbf16>
    %cst_22 = arith.constant dense<0.000000e+00> : vector<2x512xf32>
    %73 = tpu.matmul %72, %6, %cst_22 {dimension_numbers = #tpu.dot_dimension_numbers<[1], [0], [0], [1], [0, 0, 1, 1], [], []>} : vector<2x128xbf16>, vector<128x512xbf16>, vector<2x512xf32> -> vector<2x512xf32>
    %74 = arith.addf %71, %73 : vector<2x512xf32>
    %75 = vector.extract_strided_slice %74 {offsets = [0, 0], sizes = [2, 128], strides = [1, 1]} : vector<2x512xf32> to vector<2x128xf32>
    %76 = arith.negf %75 : vector<2x128xf32>
    %77 = math.exp %76 : vector<2x128xf32>
    %cst_23 = arith.constant 1.000000e+00 : f32
    %78 = vector.broadcast %cst_23 : f32 to vector<2x128xf32>
    %79 = arith.addf %78, %77 : vector<2x128xf32>
    %80 = arith.divf %78, %79 : vector<2x128xf32>
    %81 = vector.extract_strided_slice %74 {offsets = [0, 128], sizes = [2, 128], strides = [1, 1]} : vector<2x512xf32> to vector<2x128xf32>
    %82 = arith.negf %81 : vector<2x128xf32>
    %83 = math.exp %82 : vector<2x128xf32>
    %cst_24 = arith.constant 1.000000e+00 : f32
    %84 = vector.broadcast %cst_24 : f32 to vector<2x128xf32>
    %85 = arith.addf %84, %83 : vector<2x128xf32>
    %86 = arith.divf %84, %85 : vector<2x128xf32>
    %87 = vector.extract_strided_slice %74 {offsets = [0, 256], sizes = [2, 128], strides = [1, 1]} : vector<2x512xf32> to vector<2x128xf32>
    %88 = math.tanh %87 : vector<2x128xf32>
    %89 = vector.extract_strided_slice %74 {offsets = [0, 384], sizes = [2, 128], strides = [1, 1]} : vector<2x512xf32> to vector<2x128xf32>
    %90 = arith.negf %89 : vector<2x128xf32>
    %91 = math.exp %90 : vector<2x128xf32>
    %cst_25 = arith.constant 1.000000e+00 : f32
    %92 = vector.broadcast %cst_25 : f32 to vector<2x128xf32>
    %93 = arith.addf %92, %91 : vector<2x128xf32>
    %94 = arith.divf %92, %93 : vector<2x128xf32>
    %95 = arith.mulf %86, %66 : vector<2x128xf32>
    %96 = arith.mulf %80, %88 : vector<2x128xf32>
    %97 = arith.addf %95, %96 : vector<2x128xf32>
    %98 = math.tanh %97 : vector<2x128xf32>
    %99 = arith.mulf %94, %98 : vector<2x128xf32>
    %c4 = arith.constant 4 : index
    %c0_26 = arith.constant 0 : index
    %100 = vector.load %arg15[%c4, %c0_26] : memref<16x128xf32, #tpu.memory_space<vmem>>, vector<2x128xf32>
    tpu.vector_store %arg15[%c4, %c0_26], %99 {strides = array<i32>} : memref<16x128xf32, #tpu.memory_space<vmem>>, vector<2x128xf32>,
    %c10 = arith.constant 10 : index
    %c0_27 = arith.constant 0 : index
    %101 = vector.load %arg16[%c10, %c0_27] : memref<16x128xf32, #tpu.memory_space<vmem>>, vector<2x128xf32>
    tpu.vector_store %arg16[%c10, %c0_27], %99 {strides = array<i32>} : memref<16x128xf32, #tpu.memory_space<vmem>>, vector<2x128xf32>,
    %102 = vector.extract_strided_slice %5 {offsets = [6, 0], sizes = [2, 512], strides = [1, 1]} : vector<16x512xf32> to vector<2x512xf32>
    %103 = arith.truncf %99 : vector<2x128xf32> to vector<2x128xbf16>
    %cst_28 = arith.constant dense<0.000000e+00> : vector<2x512xf32>
    %104 = tpu.matmul %103, %6, %cst_28 {dimension_numbers = #tpu.dot_dimension_numbers<[1], [0], [0], [1], [0, 0, 1, 1], [], []>} : vector<2x128xbf16>, vector<128x512xbf16>, vector<2x512xf32> -> vector<2x512xf32>
    %105 = arith.addf %102, %104 : vector<2x512xf32>
    %106 = vector.extract_strided_slice %105 {offsets = [0, 0], sizes = [2, 128], strides = [1, 1]} : vector<2x512xf32> to vector<2x128xf32>
    %107 = arith.negf %106 : vector<2x128xf32>
    %108 = math.exp %107 : vector<2x128xf32>
    %cst_29 = arith.constant 1.000000e+00 : f32
    %109 = vector.broadcast %cst_29 : f32 to vector<2x128xf32>
    %110 = arith.addf %109, %108 : vector<2x128xf32>
    %111 = arith.divf %109, %110 : vector<2x128xf32>
    %112 = vector.extract_strided_slice %105 {offsets = [0, 128], sizes = [2, 128], strides = [1, 1]} : vector<2x512xf32> to vector<2x128xf32>
    %113 = arith.negf %112 : vector<2x128xf32>
    %114 = math.exp %113 : vector<2x128xf32>
    %cst_30 = arith.constant 1.000000e+00 : f32
    %115 = vector.broadcast %cst_30 : f32 to vector<2x128xf32>
    %116 = arith.addf %115, %114 : vector<2x128xf32>
    %117 = arith.divf %115, %116 : vector<2x128xf32>
    %118 = vector.extract_strided_slice %105 {offsets = [0, 256], sizes = [2, 128], strides = [1, 1]} : vector<2x512xf32> to vector<2x128xf32>
    %119 = math.tanh %118 : vector<2x128xf32>
    %120 = vector.extract_strided_slice %105 {offsets = [0, 384], sizes = [2, 128], strides = [1, 1]} : vector<2x512xf32> to vector<2x128xf32>
    %121 = arith.negf %120 : vector<2x128xf32>
    %122 = math.exp %121 : vector<2x128xf32>
    %cst_31 = arith.constant 1.000000e+00 : f32
    %123 = vector.broadcast %cst_31 : f32 to vector<2x128xf32>
    %124 = arith.addf %123, %122 : vector<2x128xf32>
    %125 = arith.divf %123, %124 : vector<2x128xf32>
    %126 = arith.mulf %117, %97 : vector<2x128xf32>
    %127 = arith.mulf %111, %119 : vector<2x128xf32>
    %128 = arith.addf %126, %127 : vector<2x128xf32>
    %129 = math.tanh %128 : vector<2x128xf32>
    %130 = arith.mulf %125, %129 : vector<2x128xf32>
    %c6 = arith.constant 6 : index
    %c0_32 = arith.constant 0 : index
    %131 = vector.load %arg15[%c6, %c0_32] : memref<16x128xf32, #tpu.memory_space<vmem>>, vector<2x128xf32>
    tpu.vector_store %arg15[%c6, %c0_32], %130 {strides = array<i32>} : memref<16x128xf32, #tpu.memory_space<vmem>>, vector<2x128xf32>,
    %c8 = arith.constant 8 : index
    %c0_33 = arith.constant 0 : index
    %132 = vector.load %arg16[%c8, %c0_33] : memref<16x128xf32, #tpu.memory_space<vmem>>, vector<2x128xf32>
    tpu.vector_store %arg16[%c8, %c0_33], %130 {strides = array<i32>} : memref<16x128xf32, #tpu.memory_space<vmem>>, vector<2x128xf32>,
    %133 = vector.extract_strided_slice %5 {offsets = [8, 0], sizes = [2, 512], strides = [1, 1]} : vector<16x512xf32> to vector<2x512xf32>
    %134 = arith.truncf %130 : vector<2x128xf32> to vector<2x128xbf16>
    %cst_34 = arith.constant dense<0.000000e+00> : vector<2x512xf32>
    %135 = tpu.matmul %134, %6, %cst_34 {dimension_numbers = #tpu.dot_dimension_numbers<[1], [0], [0], [1], [0, 0, 1, 1], [], []>} : vector<2x128xbf16>, vector<128x512xbf16>, vector<2x512xf32> -> vector<2x512xf32>
    %136 = arith.addf %133, %135 : vector<2x512xf32>
    %137 = vector.extract_strided_slice %136 {offsets = [0, 0], sizes = [2, 128], strides = [1, 1]} : vector<2x512xf32> to vector<2x128xf32>
    %138 = arith.negf %137 : vector<2x128xf32>
    %139 = math.exp %138 : vector<2x128xf32>
    %cst_35 = arith.constant 1.000000e+00 : f32
    %140 = vector.broadcast %cst_35 : f32 to vector<2x128xf32>
    %141 = arith.addf %140, %139 : vector<2x128xf32>
    %142 = arith.divf %140, %141 : vector<2x128xf32>
    %143 = vector.extract_strided_slice %136 {offsets = [0, 128], sizes = [2, 128], strides = [1, 1]} : vector<2x512xf32> to vector<2x128xf32>
    %144 = arith.negf %143 : vector<2x128xf32>
    %145 = math.exp %144 : vector<2x128xf32>
    %cst_36 = arith.constant 1.000000e+00 : f32
    %146 = vector.broadcast %cst_36 : f32 to vector<2x128xf32>
    %147 = arith.addf %146, %145 : vector<2x128xf32>
    %148 = arith.divf %146, %147 : vector<2x128xf32>
    %149 = vector.extract_strided_slice %136 {offsets = [0, 256], sizes = [2, 128], strides = [1, 1]} : vector<2x512xf32> to vector<2x128xf32>
    %150 = math.tanh %149 : vector<2x128xf32>
    %151 = vector.extract_strided_slice %136 {offsets = [0, 384], sizes = [2, 128], strides = [1, 1]} : vector<2x512xf32> to vector<2x128xf32>
    %152 = arith.negf %151 : vector<2x128xf32>
    %153 = math.exp %152 : vector<2x128xf32>
    %cst_37 = arith.constant 1.000000e+00 : f32
    %154 = vector.broadcast %cst_37 : f32 to vector<2x128xf32>
    %155 = arith.addf %154, %153 : vector<2x128xf32>
    %156 = arith.divf %154, %155 : vector<2x128xf32>
    %157 = arith.mulf %148, %128 : vector<2x128xf32>
    %158 = arith.mulf %142, %150 : vector<2x128xf32>
    %159 = arith.addf %157, %158 : vector<2x128xf32>
    %160 = math.tanh %159 : vector<2x128xf32>
    %161 = arith.mulf %156, %160 : vector<2x128xf32>
    %c8_38 = arith.constant 8 : index
    %c0_39 = arith.constant 0 : index
    %162 = vector.load %arg15[%c8_38, %c0_39] : memref<16x128xf32, #tpu.memory_space<vmem>>, vector<2x128xf32>
    tpu.vector_store %arg15[%c8_38, %c0_39], %161 {strides = array<i32>} : memref<16x128xf32, #tpu.memory_space<vmem>>, vector<2x128xf32>,
    %c6_40 = arith.constant 6 : index
    %c0_41 = arith.constant 0 : index
    %163 = vector.load %arg16[%c6_40, %c0_41] : memref<16x128xf32, #tpu.memory_space<vmem>>, vector<2x128xf32>
    tpu.vector_store %arg16[%c6_40, %c0_41], %161 {strides = array<i32>} : memref<16x128xf32, #tpu.memory_space<vmem>>, vector<2x128xf32>,
    %164 = vector.extract_strided_slice %5 {offsets = [10, 0], sizes = [2, 512], strides = [1, 1]} : vector<16x512xf32> to vector<2x512xf32>
    %165 = arith.truncf %161 : vector<2x128xf32> to vector<2x128xbf16>
    %cst_42 = arith.constant dense<0.000000e+00> : vector<2x512xf32>
    %166 = tpu.matmul %165, %6, %cst_42 {dimension_numbers = #tpu.dot_dimension_numbers<[1], [0], [0], [1], [0, 0, 1, 1], [], []>} : vector<2x128xbf16>, vector<128x512xbf16>, vector<2x512xf32> -> vector<2x512xf32>
    %167 = arith.addf %164, %166 : vector<2x512xf32>
    %168 = vector.extract_strided_slice %167 {offsets = [0, 0], sizes = [2, 128], strides = [1, 1]} : vector<2x512xf32> to vector<2x128xf32>
    %169 = arith.negf %168 : vector<2x128xf32>
    %170 = math.exp %169 : vector<2x128xf32>
    %cst_43 = arith.constant 1.000000e+00 : f32
    %171 = vector.broadcast %cst_43 : f32 to vector<2x128xf32>
    %172 = arith.addf %171, %170 : vector<2x128xf32>
    %173 = arith.divf %171, %172 : vector<2x128xf32>
    %174 = vector.extract_strided_slice %167 {offsets = [0, 128], sizes = [2, 128], strides = [1, 1]} : vector<2x512xf32> to vector<2x128xf32>
    %175 = arith.negf %174 : vector<2x128xf32>
    %176 = math.exp %175 : vector<2x128xf32>
    %cst_44 = arith.constant 1.000000e+00 : f32
    %177 = vector.broadcast %cst_44 : f32 to vector<2x128xf32>
    %178 = arith.addf %177, %176 : vector<2x128xf32>
    %179 = arith.divf %177, %178 : vector<2x128xf32>
    %180 = vector.extract_strided_slice %167 {offsets = [0, 256], sizes = [2, 128], strides = [1, 1]} : vector<2x512xf32> to vector<2x128xf32>
    %181 = math.tanh %180 : vector<2x128xf32>
    %182 = vector.extract_strided_slice %167 {offsets = [0, 384], sizes = [2, 128], strides = [1, 1]} : vector<2x512xf32> to vector<2x128xf32>
    %183 = arith.negf %182 : vector<2x128xf32>
    %184 = math.exp %183 : vector<2x128xf32>
    %cst_45 = arith.constant 1.000000e+00 : f32
    %185 = vector.broadcast %cst_45 : f32 to vector<2x128xf32>
    %186 = arith.addf %185, %184 : vector<2x128xf32>
    %187 = arith.divf %185, %186 : vector<2x128xf32>
    %188 = arith.mulf %179, %159 : vector<2x128xf32>
    %189 = arith.mulf %173, %181 : vector<2x128xf32>
    %190 = arith.addf %188, %189 : vector<2x128xf32>
    %191 = math.tanh %190 : vector<2x128xf32>
    %192 = arith.mulf %187, %191 : vector<2x128xf32>
    %c10_46 = arith.constant 10 : index
    %c0_47 = arith.constant 0 : index
    %193 = vector.load %arg15[%c10_46, %c0_47] : memref<16x128xf32, #tpu.memory_space<vmem>>, vector<2x128xf32>
    tpu.vector_store %arg15[%c10_46, %c0_47], %192 {strides = array<i32>} : memref<16x128xf32, #tpu.memory_space<vmem>>, vector<2x128xf32>,
    %c4_48 = arith.constant 4 : index
    %c0_49 = arith.constant 0 : index
    %194 = vector.load %arg16[%c4_48, %c0_49] : memref<16x128xf32, #tpu.memory_space<vmem>>, vector<2x128xf32>
    tpu.vector_store %arg16[%c4_48, %c0_49], %192 {strides = array<i32>} : memref<16x128xf32, #tpu.memory_space<vmem>>, vector<2x128xf32>,
    %195 = vector.extract_strided_slice %5 {offsets = [12, 0], sizes = [2, 512], strides = [1, 1]} : vector<16x512xf32> to vector<2x512xf32>
    %196 = arith.truncf %192 : vector<2x128xf32> to vector<2x128xbf16>
    %cst_50 = arith.constant dense<0.000000e+00> : vector<2x512xf32>
    %197 = tpu.matmul %196, %6, %cst_50 {dimension_numbers = #tpu.dot_dimension_numbers<[1], [0], [0], [1], [0, 0, 1, 1], [], []>} : vector<2x128xbf16>, vector<128x512xbf16>, vector<2x512xf32> -> vector<2x512xf32>
    %198 = arith.addf %195, %197 : vector<2x512xf32>
    %199 = vector.extract_strided_slice %198 {offsets = [0, 0], sizes = [2, 128], strides = [1, 1]} : vector<2x512xf32> to vector<2x128xf32>
    %200 = arith.negf %199 : vector<2x128xf32>
    %201 = math.exp %200 : vector<2x128xf32>
    %cst_51 = arith.constant 1.000000e+00 : f32
    %202 = vector.broadcast %cst_51 : f32 to vector<2x128xf32>
    %203 = arith.addf %202, %201 : vector<2x128xf32>
    %204 = arith.divf %202, %203 : vector<2x128xf32>
    %205 = vector.extract_strided_slice %198 {offsets = [0, 128], sizes = [2, 128], strides = [1, 1]} : vector<2x512xf32> to vector<2x128xf32>
    %206 = arith.negf %205 : vector<2x128xf32>
    %207 = math.exp %206 : vector<2x128xf32>
    %cst_52 = arith.constant 1.000000e+00 : f32
    %208 = vector.broadcast %cst_52 : f32 to vector<2x128xf32>
    %209 = arith.addf %208, %207 : vector<2x128xf32>
    %210 = arith.divf %208, %209 : vector<2x128xf32>
    %211 = vector.extract_strided_slice %198 {offsets = [0, 256], sizes = [2, 128], strides = [1, 1]} : vector<2x512xf32> to vector<2x128xf32>
    %212 = math.tanh %211 : vector<2x128xf32>
    %213 = vector.extract_strided_slice %198 {offsets = [0, 384], sizes = [2, 128], strides = [1, 1]} : vector<2x512xf32> to vector<2x128xf32>
    %214 = arith.negf %213 : vector<2x128xf32>
    %215 = math.exp %214 : vector<2x128xf32>
    %cst_53 = arith.constant 1.000000e+00 : f32
    %216 = vector.broadcast %cst_53 : f32 to vector<2x128xf32>
    %217 = arith.addf %216, %215 : vector<2x128xf32>
    %218 = arith.divf %216, %217 : vector<2x128xf32>
    %219 = arith.mulf %210, %190 : vector<2x128xf32>
    %220 = arith.mulf %204, %212 : vector<2x128xf32>
    %221 = arith.addf %219, %220 : vector<2x128xf32>
    %222 = math.tanh %221 : vector<2x128xf32>
    %223 = arith.mulf %218, %222 : vector<2x128xf32>
    %c12_54 = arith.constant 12 : index
    %c0_55 = arith.constant 0 : index
    %224 = vector.load %arg15[%c12_54, %c0_55] : memref<16x128xf32, #tpu.memory_space<vmem>>, vector<2x128xf32>
    tpu.vector_store %arg15[%c12_54, %c0_55], %223 {strides = array<i32>} : memref<16x128xf32, #tpu.memory_space<vmem>>, vector<2x128xf32>,
    %c2_56 = arith.constant 2 : index
    %c0_57 = arith.constant 0 : index
    %225 = vector.load %arg16[%c2_56, %c0_57] : memref<16x128xf32, #tpu.memory_space<vmem>>, vector<2x128xf32>
    tpu.vector_store %arg16[%c2_56, %c0_57], %223 {strides = array<i32>} : memref<16x128xf32, #tpu.memory_space<vmem>>, vector<2x128xf32>,
    %226 = vector.extract_strided_slice %5 {offsets = [14, 0], sizes = [2, 512], strides = [1, 1]} : vector<16x512xf32> to vector<2x512xf32>
    %227 = arith.truncf %223 : vector<2x128xf32> to vector<2x128xbf16>
    %cst_58 = arith.constant dense<0.000000e+00> : vector<2x512xf32>
    %228 = tpu.matmul %227, %6, %cst_58 {dimension_numbers = #tpu.dot_dimension_numbers<[1], [0], [0], [1], [0, 0, 1, 1], [], []>} : vector<2x128xbf16>, vector<128x512xbf16>, vector<2x512xf32> -> vector<2x512xf32>
    %229 = arith.addf %226, %228 : vector<2x512xf32>
    %230 = vector.extract_strided_slice %229 {offsets = [0, 0], sizes = [2, 128], strides = [1, 1]} : vector<2x512xf32> to vector<2x128xf32>
    %231 = arith.negf %230 : vector<2x128xf32>
    %232 = math.exp %231 : vector<2x128xf32>
    %cst_59 = arith.constant 1.000000e+00 : f32
    %233 = vector.broadcast %cst_59 : f32 to vector<2x128xf32>
    %234 = arith.addf %233, %232 : vector<2x128xf32>
    %235 = arith.divf %233, %234 : vector<2x128xf32>
    %236 = vector.extract_strided_slice %229 {offsets = [0, 128], sizes = [2, 128], strides = [1, 1]} : vector<2x512xf32> to vector<2x128xf32>
    %237 = arith.negf %236 : vector<2x128xf32>
    %238 = math.exp %237 : vector<2x128xf32>
    %cst_60 = arith.constant 1.000000e+00 : f32
    %239 = vector.broadcast %cst_60 : f32 to vector<2x128xf32>
    %240 = arith.addf %239, %238 : vector<2x128xf32>
    %241 = arith.divf %239, %240 : vector<2x128xf32>
    %242 = vector.extract_strided_slice %229 {offsets = [0, 256], sizes = [2, 128], strides = [1, 1]} : vector<2x512xf32> to vector<2x128xf32>
    %243 = math.tanh %242 : vector<2x128xf32>
    %244 = vector.extract_strided_slice %229 {offsets = [0, 384], sizes = [2, 128], strides = [1, 1]} : vector<2x512xf32> to vector<2x128xf32>
    %245 = arith.negf %244 : vector<2x128xf32>
    %246 = math.exp %245 : vector<2x128xf32>
    %cst_61 = arith.constant 1.000000e+00 : f32
    %247 = vector.broadcast %cst_61 : f32 to vector<2x128xf32>
    %248 = arith.addf %247, %246 : vector<2x128xf32>
    %249 = arith.divf %247, %248 : vector<2x128xf32>
    %250 = arith.mulf %241, %221 : vector<2x128xf32>
    %251 = arith.mulf %235, %243 : vector<2x128xf32>
    %252 = arith.addf %250, %251 : vector<2x128xf32>
    %253 = math.tanh %252 : vector<2x128xf32>
    %254 = arith.mulf %249, %253 : vector<2x128xf32>
    %c14_62 = arith.constant 14 : index
    %c0_63 = arith.constant 0 : index
    %255 = vector.load %arg15[%c14_62, %c0_63] : memref<16x128xf32, #tpu.memory_space<vmem>>, vector<2x128xf32>
    tpu.vector_store %arg15[%c14_62, %c0_63], %254 {strides = array<i32>} : memref<16x128xf32, #tpu.memory_space<vmem>>, vector<2x128xf32>,
    %c0_64 = arith.constant 0 : index
    %c0_65 = arith.constant 0 : index
    %256 = vector.load %arg16[%c0_64, %c0_65] : memref<16x128xf32, #tpu.memory_space<vmem>>, vector<2x128xf32>
    tpu.vector_store %arg16[%c0_64, %c0_65], %254 {strides = array<i32>} : memref<16x128xf32, #tpu.memory_space<vmem>>, vector<2x128xf32>,
    %257 = tpu.iota {dimensions = array<i32: 1>} : vector<16x128xi32>
    %c64_i32 = arith.constant 64 : i32
    %258 = vector.broadcast %c64_i32 : i32 to vector<16x128xi32>
    %259 = arith.cmpi slt, %257, %258 : vector<16x128xi32>
    %c0_66 = arith.constant 0 : index
    %c0_67 = arith.constant 0 : index
    %260 = vector.load %arg15[%c0_66, %c0_67] : memref<16x128xf32, #tpu.memory_space<vmem>>, vector<16x128xf32>
    %c0_68 = arith.constant 0 : index
    %c0_69 = arith.constant 0 : index
    %261 = vector.load %arg16[%c0_68, %c0_69] : memref<16x128xf32, #tpu.memory_space<vmem>>, vector<16x128xf32>
    %262 = arith.select %259, %260, %261 : vector<16x128xi1>, vector<16x128xf32>
    %263 = arith.truncf %262 : vector<16x128xf32> to vector<16x128xbf16>
    %c0_70 = arith.constant 0 : index
    %c0_71 = arith.constant 0 : index
    %264 = vector.load %arg5[%c0_70, %c0_71] : memref<128x128xbf16, #tpu.memory_space<vmem>>, vector<128x128xbf16>
    %cst_72 = arith.constant dense<0.000000e+00> : vector<16x128xf32>
    %265 = tpu.matmul %263, %264, %cst_72 {dimension_numbers = #tpu.dot_dimension_numbers<[1], [0], [0], [1], [0, 0, 1, 1], [], []>} : vector<16x128xbf16>, vector<128x128xbf16>, vector<16x128xf32> -> vector<16x128xf32>
    %c0_73 = arith.constant 0 : index
    %c0_74 = arith.constant 0 : index
    %266 = vector.load %arg6[%c0_73, %c0_74] : memref<1x128xf32, #tpu.memory_space<vmem>>, vector<1x128xf32>
    %267 = vector.broadcast %266 : vector<1x128xf32> to vector<16x128xf32>
    %268 = arith.addf %265, %267 : vector<16x128xf32>
    %269 = math.tanh %268 : vector<16x128xf32>
    %270 = tpu.concatenate %254, %254, %254, %254, %254, %254, %254, %254 in 0 : vector<2x128xf32>, vector<2x128xf32>, vector<2x128xf32>, vector<2x128xf32>, vector<2x128xf32>, vector<2x128xf32>, vector<2x128xf32>, vector<2x128xf32> -> vector<16x128xf32>
    %271 = arith.mulf %269, %270 : vector<16x128xf32>
    %cst_75 = arith.constant dense<0.000000e+00> : vector<16xf32>
    %272 = vector.multi_reduction <add>, %271, %cst_75 [1] : vector<16x128xf32> to vector<16xf32>
    %273 = vector.shape_cast %272 : vector<16xf32> to vector<16x1xf32>
    %cst_76 = arith.constant 0.707106769 : f32
    %274 = vector.broadcast %cst_76 : f32 to vector<16x1xf32>
    %275 = arith.mulf %273, %274 : vector<16x1xf32>
    %276 = vector.shape_cast %275 : vector<16x1xf32> to vector<16x1xf32>
    %277 = vector.broadcast %276 : vector<16x1xf32> to vector<16x128xf32>
    %c2_i32 = arith.constant 2 : i32
    %278 = tpu.dynamic_rotate %277 by %c2_i32 dim 0 : vector<16x128xf32>, i32 -> vector<16x128xf32>
    %279 = arith.maximumf %277, %278 : vector<16x128xf32>
    %c4_i32 = arith.constant 4 : i32
    %280 = tpu.dynamic_rotate %277 by %c4_i32 dim 0 : vector<16x128xf32>, i32 -> vector<16x128xf32>
    %281 = arith.maximumf %279, %280 : vector<16x128xf32>
    %c6_i32 = arith.constant 6 : i32
    %282 = tpu.dynamic_rotate %277 by %c6_i32 dim 0 : vector<16x128xf32>, i32 -> vector<16x128xf32>
    %283 = arith.maximumf %281, %282 : vector<16x128xf32>
    %c8_i32 = arith.constant 8 : i32
    %284 = tpu.dynamic_rotate %277 by %c8_i32 dim 0 : vector<16x128xf32>, i32 -> vector<16x128xf32>
    %285 = arith.maximumf %283, %284 : vector<16x128xf32>
    %c10_i32 = arith.constant 10 : i32
    %286 = tpu.dynamic_rotate %277 by %c10_i32 dim 0 : vector<16x128xf32>, i32 -> vector<16x128xf32>
    %287 = arith.maximumf %285, %286 : vector<16x128xf32>
    %c12_i32 = arith.constant 12 : i32
    %288 = tpu.dynamic_rotate %277 by %c12_i32 dim 0 : vector<16x128xf32>, i32 -> vector<16x128xf32>
    %289 = arith.maximumf %287, %288 : vector<16x128xf32>
    %c14_i32 = arith.constant 14 : i32
    %290 = tpu.dynamic_rotate %277 by %c14_i32 dim 0 : vector<16x128xf32>, i32 -> vector<16x128xf32>
    %291 = arith.maximumf %289, %290 : vector<16x128xf32>
    %292 = arith.subf %277, %291 : vector<16x128xf32>
    %293 = math.exp %292 : vector<16x128xf32>
    %c2_i32_77 = arith.constant 2 : i32
    %294 = tpu.dynamic_rotate %293 by %c2_i32_77 dim 0 : vector<16x128xf32>, i32 -> vector<16x128xf32>
    %295 = arith.addf %293, %294 : vector<16x128xf32>
    %c4_i32_78 = arith.constant 4 : i32
    %296 = tpu.dynamic_rotate %293 by %c4_i32_78 dim 0 : vector<16x128xf32>, i32 -> vector<16x128xf32>
    %297 = arith.addf %295, %296 : vector<16x128xf32>
    %c6_i32_79 = arith.constant 6 : i32
    %298 = tpu.dynamic_rotate %293 by %c6_i32_79 dim 0 : vector<16x128xf32>, i32 -> vector<16x128xf32>
    %299 = arith.addf %297, %298 : vector<16x128xf32>
    %c8_i32_80 = arith.constant 8 : i32
    %300 = tpu.dynamic_rotate %293 by %c8_i32_80 dim 0 : vector<16x128xf32>, i32 -> vector<16x128xf32>
    %301 = arith.addf %299, %300 : vector<16x128xf32>
    %c10_i32_81 = arith.constant 10 : i32
    %302 = tpu.dynamic_rotate %293 by %c10_i32_81 dim 0 : vector<16x128xf32>, i32 -> vector<16x128xf32>
    %303 = arith.addf %301, %302 : vector<16x128xf32>
    %c12_i32_82 = arith.constant 12 : i32
    %304 = tpu.dynamic_rotate %293 by %c12_i32_82 dim 0 : vector<16x128xf32>, i32 -> vector<16x128xf32>
    %305 = arith.addf %303, %304 : vector<16x128xf32>
    %c14_i32_83 = arith.constant 14 : i32
    %306 = tpu.dynamic_rotate %293 by %c14_i32_83 dim 0 : vector<16x128xf32>, i32 -> vector<16x128xf32>
    %307 = arith.addf %305, %306 : vector<16x128xf32>
    %308 = tpu.reciprocal %307 {approx = true} : vector<16x128xf32> -> vector<16x128xf32>
    %309 = arith.mulf %293, %308 : vector<16x128xf32>
    %310 = arith.mulf %262, %309 : vector<16x128xf32>
    %c0_84 = arith.constant 0 : index
    %c0_85 = arith.constant 0 : index
    %311 = vector.load %arg14[%c0_84, %c0_85] : memref<16x128xf32, #tpu.memory_space<vmem>>, vector<16x128xf32>
    tpu.vector_store %arg14[%c0_84, %c0_85], %310 {strides = array<i32>} : memref<16x128xf32, #tpu.memory_space<vmem>>, vector<16x128xf32>,
    %c0_86 = arith.constant 0 : index
    %c0_87 = arith.constant 0 : index
    %312 = vector.load %arg4[%c0_86, %c0_87] : memref<2x16xbf16, #tpu.memory_space<vmem>>, vector<2x16xbf16>
    %c0_88 = arith.constant 0 : index
    %c0_89 = arith.constant 0 : index
    %313 = vector.load %arg7[%c0_88, %c0_89] : memref<16x128xbf16, #tpu.memory_space<vmem>>, vector<16x128xbf16>
    %cst_90 = arith.constant dense<0.000000e+00> : vector<2x128xf32>
    %314 = tpu.matmul %312, %313, %cst_90 {dimension_numbers = #tpu.dot_dimension_numbers<[1], [0], [0], [1], [0, 0, 1, 1], [], []>} : vector<2x16xbf16>, vector<16x128xbf16>, vector<2x128xf32> -> vector<2x128xf32>
    %c0_91 = arith.constant 0 : index
    %c0_92 = arith.constant 0 : index
    %315 = vector.load %arg8[%c0_91, %c0_92] : memref<1x128xf32, #tpu.memory_space<vmem>>, vector<1x128xf32>
    %316 = vector.broadcast %315 : vector<1x128xf32> to vector<2x128xf32>
    %317 = arith.addf %314, %316 : vector<2x128xf32>
    %cst_93 = arith.constant 0.000000e+00 : f32
    %318 = vector.broadcast %cst_93 : f32 to vector<2x128xf32>
    %319 = arith.maximumf %317, %318 : vector<2x128xf32>
    %320 = arith.truncf %319 : vector<2x128xf32> to vector<2x128xbf16>
    %c0_94 = arith.constant 0 : index
    %c0_95 = arith.constant 0 : index
    %321 = vector.load %arg9[%c0_94, %c0_95] : memref<128x128xbf16, #tpu.memory_space<vmem>>, vector<128x128xbf16>
    %cst_96 = arith.constant dense<0.000000e+00> : vector<2x128xf32>
    %322 = tpu.matmul %320, %321, %cst_96 {dimension_numbers = #tpu.dot_dimension_numbers<[1], [0], [0], [1], [0, 0, 1, 1], [], []>} : vector<2x128xbf16>, vector<128x128xbf16>, vector<2x128xf32> -> vector<2x128xf32>
    %c0_97 = arith.constant 0 : index
    %c0_98 = arith.constant 0 : index
    %323 = vector.load %arg10[%c0_97, %c0_98] : memref<1x128xf32, #tpu.memory_space<vmem>>, vector<1x128xf32>
    %324 = vector.broadcast %323 : vector<1x128xf32> to vector<2x128xf32>
    %325 = arith.addf %322, %324 : vector<2x128xf32>
    %cst_99 = arith.constant 0.000000e+00 : f32
    %326 = vector.broadcast %cst_99 : f32 to vector<2x128xf32>
    %327 = arith.maximumf %325, %326 : vector<2x128xf32>
    %328 = arith.truncf %327 : vector<2x128xf32> to vector<2x128xbf16>
    %c0_100 = arith.constant 0 : index
    %c0_101 = arith.constant 0 : index
    %329 = vector.load %arg11[%c0_100, %c0_101] : memref<128x128xbf16, #tpu.memory_space<vmem>>, vector<128x128xbf16>
    %cst_102 = arith.constant dense<0.000000e+00> : vector<2x128xf32>
    %330 = tpu.matmul %328, %329, %cst_102 {dimension_numbers = #tpu.dot_dimension_numbers<[1], [0], [0], [1], [0, 0, 1, 1], [], []>} : vector<2x128xbf16>, vector<128x128xbf16>, vector<2x128xf32> -> vector<2x128xf32>
    %c0_103 = arith.constant 0 : index
    %c0_104 = arith.constant 0 : index
    %331 = vector.load %arg12[%c0_103, %c0_104] : memref<1x128xf32, #tpu.memory_space<vmem>>, vector<1x128xf32>
    %332 = vector.broadcast %331 : vector<1x128xf32> to vector<2x128xf32>
    %333 = arith.addf %330, %332 : vector<2x128xf32>
    %334 = math.tanh %333 : vector<2x128xf32>
    %cst_105 = arith.constant 2.000000e+00 : f32
    %335 = vector.broadcast %cst_105 : f32 to vector<2x128xf32>
    %336 = arith.mulf %335, %334 : vector<2x128xf32>
    %c0_106 = arith.constant 0 : index
    %c0_107 = arith.constant 0 : index
    %337 = vector.load %arg13[%c0_106, %c0_107] : memref<2x128xf32, #tpu.memory_space<vmem>>, vector<2x128xf32>
    tpu.vector_store %arg13[%c0_106, %c0_107], %336 {strides = array<i32>} : memref<2x128xf32, #tpu.memory_space<vmem>>, vector<2x128xf32>,
    return
  }
}

</mosaic_0001>

<llo_original>
// kernel: tpu_custom_call.1
$region0: #{tpu_custom_call.1}
  #allocation0 [shape = 'u32[]', space=smem, size = 0x4, offset = 0x4, fixed_abs, tag = 'smem constant byte address 0x4 - core index']
  #allocation1 [shape = 'u32[72,128]{1,0:T(1,128)}', space=vmem, size = 0x9000, scoped, tag = 'internal scratch']
  #allocation2 [shape = 'f32[16,128]{1,0:T(8,128)}', space=vmem, size = 0x2000, scoped, tag = 'scratch operand']
  #allocation3 [shape = 'f32[16,128]{1,0:T(8,128)}', space=vmem, size = 0x2000, scoped, tag = 'scratch operand']
  %s0 = inlined_call_operand.hbm [shape: bf16[16,32], index: 0, kind: input, shape index: {}]
  %s1 = inlined_call_operand.hbm [shape: bf16[32,512], index: 1, kind: input, shape index: {}]
  %s2 = inlined_call_operand.hbm [shape: f32[1,512], index: 2, kind: input, shape index: {}]
  %s3 = inlined_call_operand.hbm [shape: bf16[128,512], index: 3, kind: input, shape index: {}]
  %s4 = inlined_call_operand.vmem [shape: bf16[2,16], index: 4, kind: input, shape index: {}]
  %s5 = inlined_call_operand.hbm [shape: bf16[128,128], index: 5, kind: input, shape index: {}]
  %s6 = inlined_call_operand.vmem [shape: f32[1,128], index: 6, kind: input, shape index: {}]
  %s7 = inlined_call_operand.hbm [shape: bf16[16,128], index: 7, kind: input, shape index: {}]
  %s8 = inlined_call_operand.vmem [shape: f32[1,128], index: 8, kind: input, shape index: {}]
  %s9 = inlined_call_operand.hbm [shape: bf16[128,128], index: 9, kind: input, shape index: {}]
  %s10 = inlined_call_operand.vmem [shape: f32[1,128], index: 10, kind: input, shape index: {}]
  %s11 = inlined_call_operand.hbm [shape: bf16[128,128], index: 11, kind: input, shape index: {}]
  %s12 = inlined_call_operand.vmem [shape: f32[1,128], index: 12, kind: input, shape index: {}]
  %s13 = inlined_call_operand.hbm [shape: f32[2,128], index: 13, kind: output, shape index: {0}]
  %s14 = inlined_call_operand.hbm [shape: f32[16,128], index: 14, kind: output, shape index: {1}]
  %15 = xla_tuple %s13, %s14
  %s16 = sld [smem:[#allocation0]]
  $region102: #{tpu_custom_call.1} parent=0
    _
  %s18 = ssub.s32 1, %s16
  %s19 = scalar_select 0, %s18, %s16
  $region1: #{tpu_custom_call.1} parent=0
    #allocation4 [shape = 'u8[4096]{0}', space=vmem, size = 0x1000, scoped, tag = 'input window, operand 0, single buffered']
    #allocation5 [shape = 's32[1]{0}', space=sflag, size = 0x4, scoped, tag = 'scoped memory for tpu_custom_call.1']
    #allocation6 [shape = 's32[1]{0}', space=sflag, size = 0x4, scoped, tag = 'scoped memory for tpu_custom_call.1']
    #allocation7 [shape = 'u8[32768]{0}', space=vmem, size = 0x8000, scoped, tag = 'input window, operand 1, single buffered']
    #allocation8 [shape = 's32[1]{0}', space=sflag, size = 0x4, scoped, tag = 'scoped memory for tpu_custom_call.1']
    #allocation9 [shape = 'u8[2048]{0}', space=vmem, size = 0x800, scoped, tag = 'input window, operand 2, single buffered']
    #allocation10 [shape = 'u8[131072]{0}', space=vmem, size = 0x20000, scoped, tag = 'input window, operand 3, single buffered']
    #allocation11 [shape = 's32[1]{0}', space=sflag, size = 0x4, scoped, tag = 'scoped memory for tpu_custom_call.1']
    #allocation12 [shape = 'u8[32768]{0}', space=vmem, size = 0x8000, scoped, tag = 'input window, operand 5, single buffered']
    #allocation13 [shape = 'u8[4096]{0}', space=vmem, size = 0x1000, scoped, tag = 'input window, operand 7, single buffered']
    #allocation14 [shape = 's32[1]{0}', space=sflag, size = 0x4, scoped, tag = 'scoped memory for tpu_custom_call.1']
    #allocation15 [shape = 'u8[32768]{0}', space=vmem, size = 0x8000, scoped, tag = 'input window, operand 9, single buffered']
    #allocation16 [shape = 'u8[32768]{0}', space=vmem, size = 0x8000, scoped, tag = 'input window, operand 11, single buffered']
    #allocation17 [shape = 's32[1]{0}', space=sflag, size = 0x4, scoped, tag = 'scoped memory for tpu_custom_call.1']
    #allocation18 [shape = 'u8[1024]{0}', space=vmem, size = 0x400, scoped, tag = 'output window, operand 0, single buffered']
    #allocation19 [shape = 'u8[8192]{0}', space=vmem, size = 0x2000, scoped, tag = 'output window, operand 1, single buffered']
    #allocation20 [shape = 's32[1]{0}', space=sflag, size = 0x4, scoped, tag = 'scoped memory for tpu_custom_call.1']
    %20 = vsyncpa [#allocation5], 0
    %21 = vsyncpa [#allocation8], 0
    %22 = vsyncpa [#allocation11], 0
    %23 = vsyncpa [#allocation14], 0
    %24 = vsyncpa [#allocation17], 0
    %25 = vsyncpa [#allocation6], 0
    %26 = vsyncpa [#allocation20], 0
    // Predicated region
    $region2: #{tpu_custom_call.1} parent=1 // pred_check
      _
    $region3: #{tpu_custom_call.1} parent=1 // pred_check_branch
      %28 = sbr.rel (0) target = $region5
    $region4: #{tpu_custom_call.1} parent=1 // pred_region
      %30 = vsyncadd [#allocation5], 0
      %s31 = sshll.u32 %s0, 4
      %s32 = int_to_ptr.hbm [resolvable:$true] %s31
      %s33 = sshll.u32 [#allocation4], 4
      %s34 = int_to_ptr.vmem [resolvable:$true] %s33
      %39 = dma.hbm_to_vmem [thread:$0]  %s32, 128, %s34, [#allocation5], 64, 64, 4
    $region5: #{tpu_custom_call.1} parent=1 // pred_fallthru
      _
    // Predicated region
    $region6: #{tpu_custom_call.1} parent=1 // pred_check
      _
    $region7: #{tpu_custom_call.1} parent=1 // pred_check_branch
      %41 = sbr.rel (0) target = $region9
    $region8: #{tpu_custom_call.1} parent=1 // pred_region
      %43 = vsyncadd [#allocation8], 0
      %s44 = sshll.u32 %s1, 4
      %s45 = int_to_ptr.hbm [resolvable:$true] %s44
      %s46 = sshll.u32 [#allocation7], 4
      %s47 = int_to_ptr.vmem [resolvable:$true] %s46
      %52 = dma.hbm_to_vmem [thread:$0]  %s45, 1024, %s47, [#allocation8], 256, 256, 16
    $region9: #{tpu_custom_call.1} parent=1 // pred_fallthru
      _
    // Predicated region
    $region10: #{tpu_custom_call.1} parent=1 // pred_check
      _
    $region11: #{tpu_custom_call.1} parent=1 // pred_check_branch
      %54 = sbr.rel (0) target = $region13
    $region12: #{tpu_custom_call.1} parent=1 // pred_region
      %56 = vsyncadd [#allocation8], 0
      %s58 = sshll.u32 %s2, 4
      %s59 = int_to_ptr.hbm [resolvable:$true] %s58
      %s60 = sshll.u32 [#allocation9], 4
      %s61 = int_to_ptr.vmem [resolvable:$true] %s60
      %63 = dma.hbm_to_vmem [thread:$0]  %s59, 64, %s61, [#allocation8]
    $region13: #{tpu_custom_call.1} parent=1 // pred_fallthru
      _
    // Predicated region
    $region14: #{tpu_custom_call.1} parent=1 // pred_check
      _
    $region15: #{tpu_custom_call.1} parent=1 // pred_check_branch
      %65 = sbr.rel (0) target = $region17
    $region16: #{tpu_custom_call.1} parent=1 // pred_region
      %67 = vsyncadd [#allocation11], 0
      %s68 = sshll.u32 %s3, 4
      %s69 = int_to_ptr.hbm [resolvable:$true] %s68
      %s70 = sshll.u32 [#allocation10], 4
      %s71 = int_to_ptr.vmem [resolvable:$true] %s70
      %76 = dma.hbm_to_vmem [thread:$0]  %s69, 4096, %s71, [#allocation11], 256, 256, 16
    $region17: #{tpu_custom_call.1} parent=1 // pred_fallthru
      _
    // Predicated region
    $region18: #{tpu_custom_call.1} parent=1 // pred_check
      _
    $region19: #{tpu_custom_call.1} parent=1 // pred_check_branch
      %78 = sbr.rel (0) target = $region21
    $region20: #{tpu_custom_call.1} parent=1 // pred_region
      _
    $region21: #{tpu_custom_call.1} parent=1 // pred_fallthru
      _
    // Predicated region
    $region22: #{tpu_custom_call.1} parent=1 // pred_check
      _
    $region23: #{tpu_custom_call.1} parent=1 // pred_check_branch
      %80 = sbr.rel (0) target = $region25
    $region24: #{tpu_custom_call.1} parent=1 // pred_region
      %82 = vsyncadd [#allocation11], 0
      %s83 = sshll.u32 %s5, 4
      %s84 = int_to_ptr.hbm [resolvable:$true] %s83
      %s85 = sshll.u32 [#allocation12], 4
      %s86 = int_to_ptr.vmem [resolvable:$true] %s85
      %91 = dma.hbm_to_vmem [thread:$0]  %s84, 1024, %s86, [#allocation11], 64, 64, 4
    $region25: #{tpu_custom_call.1} parent=1 // pred_fallthru
      _
    // Predicated region
    $region26: #{tpu_custom_call.1} parent=1 // pred_check
      _
    $region27: #{tpu_custom_call.1} parent=1 // pred_check_branch
      %93 = sbr.rel (0) target = $region29
    $region28: #{tpu_custom_call.1} parent=1 // pred_region
      _
    $region29: #{tpu_custom_call.1} parent=1 // pred_fallthru
      _
    // Predicated region
    $region30: #{tpu_custom_call.1} parent=1 // pred_check
      _
    $region31: #{tpu_custom_call.1} parent=1 // pred_check_branch
      %95 = sbr.rel (0) target = $region33
    $region32: #{tpu_custom_call.1} parent=1 // pred_region
      %97 = vsyncadd [#allocation14], 0
      %s98 = sshll.u32 %s7, 4
      %s99 = int_to_ptr.hbm [resolvable:$true] %s98
      %s100 = sshll.u32 [#allocation13], 4
      %s101 = int_to_ptr.vmem [resolvable:$true] %s100
      %106 = dma.hbm_to_vmem [thread:$0]  %s99, 128, %s101, [#allocation14], 64, 64, 4
    $region33: #{tpu_custom_call.1} parent=1 // pred_fallthru
      _
    // Predicated region
    $region34: #{tpu_custom_call.1} parent=1 // pred_check
      _
    $region35: #{tpu_custom_call.1} parent=1 // pred_check_branch
      %108 = sbr.rel (0) target = $region37
    $region36: #{tpu_custom_call.1} parent=1 // pred_region
      _
    $region37: #{tpu_custom_call.1} parent=1 // pred_fallthru
      _
    // Predicated region
    $region38: #{tpu_custom_call.1} parent=1 // pred_check
      _
    $region39: #{tpu_custom_call.1} parent=1 // pred_check_branch
      %110 = sbr.rel (0) target = $region41
    $region40: #{tpu_custom_call.1} parent=1 // pred_region
      %112 = vsyncadd [#allocation14], 0
      %s113 = sshll.u32 %s9, 4
      %s114 = int_to_ptr.hbm [resolvable:$true] %s113
      %s115 = sshll.u32 [#allocation15], 4
      %s116 = int_to_ptr.vmem [resolvable:$true] %s115
      %121 = dma.hbm_to_vmem [thread:$0]  %s114, 1024, %s116, [#allocation14], 64, 64, 4
    $region41: #{tpu_custom_call.1} parent=1 // pred_fallthru
      _
    // Predicated region
    $region42: #{tpu_custom_call.1} parent=1 // pred_check
      _
    $region43: #{tpu_custom_call.1} parent=1 // pred_check_branch
      %123 = sbr.rel (0) target = $region45
    $region44: #{tpu_custom_call.1} parent=1 // pred_region
      _
    $region45: #{tpu_custom_call.1} parent=1 // pred_fallthru
      _
    // Predicated region
    $region46: #{tpu_custom_call.1} parent=1 // pred_check
      _
    $region47: #{tpu_custom_call.1} parent=1 // pred_check_branch
      %125 = sbr.rel (0) target = $region49
    $region48: #{tpu_custom_call.1} parent=1 // pred_region
      %127 = vsyncadd [#allocation17], 0
      %s128 = sshll.u32 %s11, 4
      %s129 = int_to_ptr.hbm [resolvable:$true] %s128
      %s130 = sshll.u32 [#allocation16], 4
      %s131 = int_to_ptr.vmem [resolvable:$true] %s130
      %136 = dma.hbm_to_vmem [thread:$0]  %s129, 1024, %s131, [#allocation17], 64, 64, 4
    $region49: #{tpu_custom_call.1} parent=1 // pred_fallthru
      _
    // Predicated region
    $region50: #{tpu_custom_call.1} parent=1 // pred_check
      _
    $region51: #{tpu_custom_call.1} parent=1 // pred_check_branch
      %138 = sbr.rel (0) target = $region53
    $region52: #{tpu_custom_call.1} parent=1 // pred_region
      _
    $region53: #{tpu_custom_call.1} parent=1 // pred_fallthru
      _
    // Predicated region
    $region54: #{tpu_custom_call.1} parent=1 // pred_check
      _
    $region55: #{tpu_custom_call.1} parent=1 // pred_check_branch
      %140 = sbr.rel (0) target = $region57
    $region56: #{tpu_custom_call.1} parent=1 // pred_region
      %142 = dma.done [#allocation5], 128
    $region57: #{tpu_custom_call.1} parent=1 // pred_fallthru
      _
    // Predicated region
    $region58: #{tpu_custom_call.1} parent=1 // pred_check
      _
    $region59: #{tpu_custom_call.1} parent=1 // pred_check_branch
      %144 = sbr.rel (0) target = $region61
    $region60: #{tpu_custom_call.1} parent=1 // pred_region
      %146 = dma.done [#allocation8], 1024
    $region61: #{tpu_custom_call.1} parent=1 // pred_fallthru
      _
    // Predicated region
    $region62: #{tpu_custom_call.1} parent=1 // pred_check
      _
    $region63: #{tpu_custom_call.1} parent=1 // pred_check_branch
      %148 = sbr.rel (0) target = $region65
    $region64: #{tpu_custom_call.1} parent=1 // pred_region
      %150 = dma.done [#allocation8], 64
    $region65: #{tpu_custom_call.1} parent=1 // pred_fallthru
      _
    // Predicated region
    $region66: #{tpu_custom_call.1} parent=1 // pred_check
      _
    $region67: #{tpu_custom_call.1} parent=1 // pred_check_branch
      %152 = sbr.rel (0) target = $region69
    $region68: #{tpu_custom_call.1} parent=1 // pred_region
      %154 = dma.done [#allocation11], 4096
    $region69: #{tpu_custom_call.1} parent=1 // pred_fallthru
      _
    // Predicated region
    $region70: #{tpu_custom_call.1} parent=1 // pred_check
      _
    $region71: #{tpu_custom_call.1} parent=1 // pred_check_branch
      %156 = sbr.rel (0) target = $region73
    $region72: #{tpu_custom_call.1} parent=1 // pred_region
      %158 = dma.done [#allocation11], 1024
    $region73: #{tpu_custom_call.1} parent=1 // pred_fallthru
      _
    // Predicated region
    $region74: #{tpu_custom_call.1} parent=1 // pred_check
      _
    $region75: #{tpu_custom_call.1} parent=1 // pred_check_branch
      %160 = sbr.rel (0) target = $region77
    $region76: #{tpu_custom_call.1} parent=1 // pred_region
      %162 = dma.done [#allocation14], 128
    $region77: #{tpu_custom_call.1} parent=1 // pred_fallthru
      _
    // Predicated region
    $region78: #{tpu_custom_call.1} parent=1 // pred_check
      _
    $region79: #{tpu_custom_call.1} parent=1 // pred_check_branch
      %164 = sbr.rel (0) target = $region81
    $region80: #{tpu_custom_call.1} parent=1 // pred_region
      %166 = dma.done [#allocation14], 1024
    $region81: #{tpu_custom_call.1} parent=1 // pred_fallthru
      _
    // Predicated region
    $region82: #{tpu_custom_call.1} parent=1 // pred_check
      _
    $region83: #{tpu_custom_call.1} parent=1 // pred_check_branch
      %168 = sbr.rel (0) target = $region85
    $region84: #{tpu_custom_call.1} parent=1 // pred_region
      %170 = dma.done [#allocation17], 1024
    $region85: #{tpu_custom_call.1} parent=1 // pred_fallthru
      _
    %v172 = vld [vmem:[#allocation4] sm:$0xf]
    %v173 = vld [vmem:[#allocation4 + $0x4] sm:$0xf]
    %v174 = vld [vmem:[#allocation7] sm:$0xff]
    %v175 = vld [vmem:[#allocation7 + $0x8] sm:$0xff]
    %v176 = vld [vmem:[#allocation7 + $0x10] sm:$0xff]
    %v177 = vld [vmem:[#allocation7 + $0x18] sm:$0xff]
    %v178 = vld [vmem:[#allocation7 + $0x20] sm:$0xff]
    %v179 = vld [vmem:[#allocation7 + $0x28] sm:$0xff]
    %v180 = vld [vmem:[#allocation7 + $0x30] sm:$0xff]
    %v181 = vld [vmem:[#allocation7 + $0x38] sm:$0xff]
    %v182 = vld [vmem:[#allocation9] sm:$0xf]
    %v184 = vperm.slane %v182, 0
    %v185 = vperm.slane %v182, 1
    %v186 = vperm.slane %v182, 2
    %v187 = vperm.slane %v182, 3
    %v194 = vunpack.c.l.b16 %v172
    %v195 = vunpack.c.l.b16 %v173
    %v196 = vpack.c.b16 %v195, %v194
    %v205 = vunpack.c.l.b16 %v174
    %v206 = vunpack.c.h.b16 %v174
    %v207 = vunpack.c.l.b16 %v175
    %v208 = vunpack.c.h.b16 %v175
    %v209 = vunpack.c.l.b16 %v176
    %v210 = vunpack.c.h.b16 %v176
    %v211 = vunpack.c.l.b16 %v177
    %v212 = vunpack.c.h.b16 %v177
    %v213 = vunpack.c.l.b16 %v178
    %v214 = vunpack.c.h.b16 %v178
    %v215 = vunpack.c.l.b16 %v179
    %v216 = vunpack.c.h.b16 %v179
    %v217 = vunpack.c.l.b16 %v180
    %v218 = vunpack.c.h.b16 %v180
    %v219 = vunpack.c.l.b16 %v181
    %v220 = vunpack.c.h.b16 %v181
    %v221 = vpack.c.b16 %v209, %v205
    %v222 = vpack.c.b16 %v210, %v206
    %v223 = vpack.c.b16 %v211, %v207
    %v224 = vpack.c.b16 %v212, %v208
    %v225 = vpack.c.b16 %v217, %v213
    %v226 = vpack.c.b16 %v218, %v214
    %v227 = vpack.c.b16 %v219, %v215
    %v228 = vpack.c.b16 %v220, %v216
    %vm237 = vcmask 261120
    %v239 = vsel %vm237, %v196, 0
    %241 = vmatpush.bf16.msra.mxu0 0
    %242 = vmatpush.bf16.msra.mxu0 0
    %243 = vmatpush.bf16.msra.mxu0 0
    %244 = vmatpush.bf16.msra.mxu0 0
    %245 = vmatpush.bf16.msra.mxu0 0
    %246 = vmatpush.bf16.msra.mxu0 0
    %247 = vmatpush.bf16.msra.mxu0 %v225
    %248 = vmatpush.bf16.msra.mxu0 %v221
    %249 = vmatmul.bf16.gmra.mxu0 %v239
    %v250 = vpop.f32.mrf.mxu0
    %v251 = vadd.f32 %v184, %v250
    %v252 = vpop.f32.mrf.mxu0
    %v253 = vadd.f32 %v184, %v252
    %254 = vdwg.mxu0
    %255 = vmatpush.bf16.msra.mxu0 0
    %256 = vmatpush.bf16.msra.mxu0 0
    %257 = vmatpush.bf16.msra.mxu0 0
    %258 = vmatpush.bf16.msra.mxu0 0
    %259 = vmatpush.bf16.msra.mxu0 0
    %260 = vmatpush.bf16.msra.mxu0 0
    %261 = vmatpush.bf16.msra.mxu0 %v226
    %262 = vmatpush.bf16.msra.mxu0 %v222
    %263 = vmatmul.bf16.gmra.mxu0 %v239
    %v264 = vpop.f32.mrf.mxu0
    %v265 = vadd.f32 %v185, %v264
    %v266 = vpop.f32.mrf.mxu0
    %v267 = vadd.f32 %v185, %v266
    %268 = vdwg.mxu0
    %269 = vmatpush.bf16.msra.mxu0 0
    %270 = vmatpush.bf16.msra.mxu0 0
    %271 = vmatpush.bf16.msra.mxu0 0
    %272 = vmatpush.bf16.msra.mxu0 0
    %273 = vmatpush.bf16.msra.mxu0 0
    %274 = vmatpush.bf16.msra.mxu0 0
    %275 = vmatpush.bf16.msra.mxu0 %v227
    %276 = vmatpush.bf16.msra.mxu0 %v223
    %277 = vmatmul.bf16.gmra.mxu0 %v239
    %v278 = vpop.f32.mrf.mxu0
    %v279 = vadd.f32 %v186, %v278
    %v280 = vpop.f32.mrf.mxu0
    %v281 = vadd.f32 %v186, %v280
    %282 = vdwg.mxu0
    %283 = vmatpush.bf16.msra.mxu0 0
    %284 = vmatpush.bf16.msra.mxu0 0
    %285 = vmatpush.bf16.msra.mxu0 0
    %286 = vmatpush.bf16.msra.mxu0 0
    %287 = vmatpush.bf16.msra.mxu0 0
    %288 = vmatpush.bf16.msra.mxu0 0
    %289 = vmatpush.bf16.msra.mxu0 %v228
    %290 = vmatpush.bf16.msra.mxu0 %v224
    %291 = vmatmul.bf16.gmra.mxu0 %v239
    %v292 = vpop.f32.mrf.mxu0
    %v293 = vadd.f32 %v187, %v292
    %v294 = vpop.f32.mrf.mxu0
    %v295 = vadd.f32 %v187, %v294
    %296 = vdwg.mxu0
    %v297 = vld [vmem:[#allocation10] sm:$0xff]
    %v298 = vld [vmem:[#allocation10 + $0x8] sm:$0xff]
    %v299 = vld [vmem:[#allocation10 + $0x10] sm:$0xff]
    %v300 = vld [vmem:[#allocation10 + $0x18] sm:$0xff]
    %v301 = vld [vmem:[#allocation10 + $0x20] sm:$0xff]
    %v302 = vld [vmem:[#allocation10 + $0x28] sm:$0xff]
    %v303 = vld [vmem:[#allocation10 + $0x30] sm:$0xff]
    %v304 = vld [vmem:[#allocation10 + $0x38] sm:$0xff]
    %v305 = vld [vmem:[#allocation10 + $0x40] sm:$0xff]
    %v306 = vld [vmem:[#allocation10 + $0x48] sm:$0xff]
    %v307 = vld [vmem:[#allocation10 + $0x50] sm:$0xff]
    %v308 = vld [vmem:[#allocation10 + $0x58] sm:$0xff]
    %v309 = vld [vmem:[#allocation10 + $0x60] sm:$0xff]
    %v310 = vld [vmem:[#allocation10 + $0x68] sm:$0xff]
    %v311 = vld [vmem:[#allocation10 + $0x70] sm:$0xff]
    %v312 = vld [vmem:[#allocation10 + $0x78] sm:$0xff]
    %v313 = vld [vmem:[#allocation10 + $0x80] sm:$0xff]
    %v314 = vld [vmem:[#allocation10 + $0x88] sm:$0xff]
    %v315 = vld [vmem:[#allocation10 + $0x90] sm:$0xff]
    %v316 = vld [vmem:[#allocation10 + $0x98] sm:$0xff]
    %v317 = vld [vmem:[#allocation10 + $0xa0] sm:$0xff]
    %v318 = vld [vmem:[#allocation10 + $0xa8] sm:$0xff]
    %v319 = vld [vmem:[#allocation10 + $0xb0] sm:$0xff]
    %v320 = vld [vmem:[#allocation10 + $0xb8] sm:$0xff]
    %v321 = vld [vmem:[#allocation10 + $0xc0] sm:$0xff]
    %v322 = vld [vmem:[#allocation10 + $0xc8] sm:$0xff]
    %v323 = vld [vmem:[#allocation10 + $0xd0] sm:$0xff]
    %v324 = vld [vmem:[#allocation10 + $0xd8] sm:$0xff]
    %v325 = vld [vmem:[#allocation10 + $0xe0] sm:$0xff]
    %v326 = vld [vmem:[#allocation10 + $0xe8] sm:$0xff]
    %v327 = vld [vmem:[#allocation10 + $0xf0] sm:$0xff]
    %v328 = vld [vmem:[#allocation10 + $0xf8] sm:$0xff]
    %v361 = vunpack.c.l.b16 %v297
    %v362 = vunpack.c.h.b16 %v297
    %v363 = vunpack.c.l.b16 %v298
    %v364 = vunpack.c.h.b16 %v298
    %v365 = vunpack.c.l.b16 %v299
    %v366 = vunpack.c.h.b16 %v299
    %v367 = vunpack.c.l.b16 %v300
    %v368 = vunpack.c.h.b16 %v300
    %v369 = vunpack.c.l.b16 %v301
    %v370 = vunpack.c.h.b16 %v301
    %v371 = vunpack.c.l.b16 %v302
    %v372 = vunpack.c.h.b16 %v302
    %v373 = vunpack.c.l.b16 %v303
    %v374 = vunpack.c.h.b16 %v303
    %v375 = vunpack.c.l.b16 %v304
    %v376 = vunpack.c.h.b16 %v304
    %v377 = vunpack.c.l.b16 %v305
    %v378 = vunpack.c.h.b16 %v305
    %v379 = vunpack.c.l.b16 %v306
    %v380 = vunpack.c.h.b16 %v306
    %v381 = vunpack.c.l.b16 %v307
    %v382 = vunpack.c.h.b16 %v307
    %v383 = vunpack.c.l.b16 %v308
    %v384 = vunpack.c.h.b16 %v308
    %v385 = vunpack.c.l.b16 %v309
    %v386 = vunpack.c.h.b16 %v309
    %v387 = vunpack.c.l.b16 %v310
    %v388 = vunpack.c.h.b16 %v310
    %v389 = vunpack.c.l.b16 %v311
    %v390 = vunpack.c.h.b16 %v311
    %v391 = vunpack.c.l.b16 %v312
    %v392 = vunpack.c.h.b16 %v312
    %v393 = vunpack.c.l.b16 %v313
    %v394 = vunpack.c.h.b16 %v313
    %v395 = vunpack.c.l.b16 %v314
    %v396 = vunpack.c.h.b16 %v314
    %v397 = vunpack.c.l.b16 %v315
    %v398 = vunpack.c.h.b16 %v315
    %v399 = vunpack.c.l.b16 %v316
    %v400 = vunpack.c.h.b16 %v316
    %v401 = vunpack.c.l.b16 %v317
    %v402 = vunpack.c.h.b16 %v317
    %v403 = vunpack.c.l.b16 %v318
    %v404 = vunpack.c.h.b16 %v318
    %v405 = vunpack.c.l.b16 %v319
    %v406 = vunpack.c.h.b16 %v319
    %v407 = vunpack.c.l.b16 %v320
    %v408 = vunpack.c.h.b16 %v320
    %v409 = vunpack.c.l.b16 %v321
    %v410 = vunpack.c.h.b16 %v321
    %v411 = vunpack.c.l.b16 %v322
    %v412 = vunpack.c.h.b16 %v322
    %v413 = vunpack.c.l.b16 %v323
    %v414 = vunpack.c.h.b16 %v323
    %v415 = vunpack.c.l.b16 %v324
    %v416 = vunpack.c.h.b16 %v324
    %v417 = vunpack.c.l.b16 %v325
    %v418 = vunpack.c.h.b16 %v325
    %v419 = vunpack.c.l.b16 %v326
    %v420 = vunpack.c.h.b16 %v326
    %v421 = vunpack.c.l.b16 %v327
    %v422 = vunpack.c.h.b16 %v327
    %v423 = vunpack.c.l.b16 %v328
    %v424 = vunpack.c.h.b16 %v328
    %v425 = vpack.c.b16 %v365, %v361
    %v426 = vpack.c.b16 %v366, %v362
    %v427 = vpack.c.b16 %v367, %v363
    %v428 = vpack.c.b16 %v368, %v364
    %v429 = vpack.c.b16 %v373, %v369
    %v430 = vpack.c.b16 %v374, %v370
    %v431 = vpack.c.b16 %v375, %v371
    %v432 = vpack.c.b16 %v376, %v372
    %v433 = vpack.c.b16 %v381, %v377
    %v434 = vpack.c.b16 %v382, %v378
    %v435 = vpack.c.b16 %v383, %v379
    %v436 = vpack.c.b16 %v384, %v380
    %v437 = vpack.c.b16 %v389, %v385
    %v438 = vpack.c.b16 %v390, %v386
    %v439 = vpack.c.b16 %v391, %v387
    %v440 = vpack.c.b16 %v392, %v388
    %v441 = vpack.c.b16 %v397, %v393
    %v442 = vpack.c.b16 %v398, %v394
    %v443 = vpack.c.b16 %v399, %v395
    %v444 = vpack.c.b16 %v400, %v396
    %v445 = vpack.c.b16 %v405, %v401
    %v446 = vpack.c.b16 %v406, %v402
    %v447 = vpack.c.b16 %v407, %v403
    %v448 = vpack.c.b16 %v408, %v404
    %v449 = vpack.c.b16 %v413, %v409
    %v450 = vpack.c.b16 %v414, %v410
    %v451 = vpack.c.b16 %v415, %v411
    %v452 = vpack.c.b16 %v416, %v412
    %v453 = vpack.c.b16 %v421, %v417
    %v454 = vpack.c.b16 %v422, %v418
    %v455 = vpack.c.b16 %v423, %v419
    %v456 = vpack.c.b16 %v424, %v420
    %489 = vmatpush.bf16.msra.mxu0 %v453
    %490 = vmatpush.bf16.msra.mxu0 %v449
    %491 = vmatpush.bf16.msra.mxu0 %v445
    %492 = vmatpush.bf16.msra.mxu0 %v441
    %493 = vmatpush.bf16.msra.mxu0 %v437
    %494 = vmatpush.bf16.msra.mxu0 %v433
    %495 = vmatpush.bf16.msra.mxu0 %v429
    %496 = vmatpush.bf16.msra.mxu0 %v425
    %497 = vmatmul.bf16.gmra.mxu0 0
    %v498 = vpop.f32.mrf.mxu0
    %v499 = vadd.f32 0.0, %v498
    %v500 = vpop.f32.mrf.mxu0
    %501 = vdwg.mxu0
    %502 = vmatpush.bf16.msra.mxu0 %v454
    %503 = vmatpush.bf16.msra.mxu0 %v450
    %504 = vmatpush.bf16.msra.mxu0 %v446
    %505 = vmatpush.bf16.msra.mxu0 %v442
    %506 = vmatpush.bf16.msra.mxu0 %v438
    %507 = vmatpush.bf16.msra.mxu0 %v434
    %508 = vmatpush.bf16.msra.mxu0 %v430
    %509 = vmatpush.bf16.msra.mxu0 %v426
    %510 = vmatmul.bf16.gmra.mxu0 0
    %v511 = vpop.f32.mrf.mxu0
    %v512 = vadd.f32 0.0, %v511
    %v513 = vpop.f32.mrf.mxu0
    %514 = vdwg.mxu0
    %515 = vmatpush.bf16.msra.mxu0 %v455
    %516 = vmatpush.bf16.msra.mxu0 %v451
    %517 = vmatpush.bf16.msra.mxu0 %v447
    %518 = vmatpush.bf16.msra.mxu0 %v443
    %519 = vmatpush.bf16.msra.mxu0 %v439
    %520 = vmatpush.bf16.msra.mxu0 %v435
    %521 = vmatpush.bf16.msra.mxu0 %v431
    %522 = vmatpush.bf16.msra.mxu0 %v427
    %523 = vmatmul.bf16.gmra.mxu0 0
    %v524 = vpop.f32.mrf.mxu0
    %v525 = vadd.f32 0.0, %v524
    %v526 = vpop.f32.mrf.mxu0
    %527 = vdwg.mxu0
    %528 = vmatpush.bf16.msra.mxu0 %v456
    %529 = vmatpush.bf16.msra.mxu0 %v452
    %530 = vmatpush.bf16.msra.mxu0 %v448
    %531 = vmatpush.bf16.msra.mxu0 %v444
    %532 = vmatpush.bf16.msra.mxu0 %v440
    %533 = vmatpush.bf16.msra.mxu0 %v436
    %534 = vmatpush.bf16.msra.mxu0 %v432
    %535 = vmatpush.bf16.msra.mxu0 %v428
    %536 = vmatmul.bf16.gmra.mxu0 0
    %v537 = vpop.f32.mrf.mxu0
    %v538 = vadd.f32 0.0, %v537
    %v539 = vpop.f32.mrf.mxu0
    %540 = vdwg.mxu0
    %v541 = vadd.f32 %v251, %v499
    %v542 = vadd.f32 %v265, %v512
    %v543 = vadd.f32 %v279, %v525
    %v544 = vadd.f32 %v293, %v538
    %v545 = vxor.u32 %v541, 2147483648
    %v546 = vmul.f32 %v545, 1.442695
    %v547 = vpow.pop %v546
    %v548 = vadd.f32 %v547, 1.0
    %v549 = vrcp.pop %v548
    %v550 = vmul.f32 %v548, %v549
    %v551 = vsub.f32 1.0, %v550
    %v552 = vmul.f32 %v549, %v551
    %v553 = vadd.f32 %v549, %v552
    %vm554 = vweird.f32 %v548
    %vm555 = vweird.f32 %v549
    %vm556 = vmor %vm554, %vm555
    %v557 = vsel %vm556, %v549, %v553
    %v558 = vand.u32 2147483647, %v548
    %vm559 = vcmp.eq.f32.partialorder %v558, 8.507059e+37
    %v560 = vand.u32 %v548, 2147483648
    %v561 = vor.u32 1.1754944e-38, %v560
    %v562 = vsel %vm559, %v561, %v557
    %v563 = vmul.f32 1.0, %v562
    %v564 = vxor.u32 %v542, 2147483648
    %v565 = vmul.f32 %v564, 1.442695
    %v566 = vpow.pop %v565
    %v567 = vadd.f32 %v566, 1.0
    %v568 = vrcp.pop %v567
    %v569 = vmul.f32 %v567, %v568
    %v570 = vsub.f32 1.0, %v569
    %v571 = vmul.f32 %v568, %v570
    %v572 = vadd.f32 %v568, %v571
    %vm573 = vweird.f32 %v567
    %vm574 = vweird.f32 %v568
    %vm575 = vmor %vm573, %vm574
    %v576 = vsel %vm575, %v568, %v572
    %v577 = vand.u32 2147483647, %v567
    %vm578 = vcmp.eq.f32.partialorder %v577, 8.507059e+37
    %v579 = vand.u32 %v567, 2147483648
    %v580 = vor.u32 1.1754944e-38, %v579
    %v581 = vsel %vm578, %v580, %v576
    %v582 = vmul.f32 1.0, %v581
    %v583 = vtanh.pop %v543
    %v584 = vxor.u32 %v544, 2147483648
    %v585 = vmul.f32 %v584, 1.442695
    %v586 = vpow.pop %v585
    %v587 = vadd.f32 %v586, 1.0
    %v588 = vrcp.pop %v587
    %v589 = vmul.f32 %v587, %v588
    %v590 = vsub.f32 1.0, %v589
    %v591 = vmul.f32 %v588, %v590
    %v592 = vadd.f32 %v588, %v591
    %vm593 = vweird.f32 %v587
    %vm594 = vweird.f32 %v588
    %vm595 = vmor %vm593, %vm594
    %v596 = vsel %vm595, %v588, %v592
    %v597 = vand.u32 2147483647, %v587
    %vm598 = vcmp.eq.f32.partialorder %v597, 8.507059e+37
    %v599 = vand.u32 %v587, 2147483648
    %v600 = vor.u32 1.1754944e-38, %v599
    %v601 = vsel %vm598, %v600, %v596
    %v602 = vmul.f32 1.0, %v601
    %v603 = vmul.f32 %v582, 0.0
    %v604 = vmul.f32 %v563, %v583
    %v605 = vadd.f32 %v603, %v604
    %v606 = vtanh.pop %v605
    %v607 = vmul.f32 %v602, %v606
    %608 = vst [vmem:[#allocation2] sm:$0x3] %v607
    %609 = vst [vmem:[#allocation3 + $0xe] sm:$0x3] %v607
    %v610 = vpack.c.bf16 %v607, %v607
    %611 = vmatpush.bf16.msra.mxu0 %v453
    %612 = vmatpush.bf16.msra.mxu0 %v449
    %613 = vmatpush.bf16.msra.mxu0 %v445
    %614 = vmatpush.bf16.msra.mxu0 %v441
    %615 = vmatpush.bf16.msra.mxu0 %v437
    %616 = vmatpush.bf16.msra.mxu0 %v433
    %617 = vmatpush.bf16.msra.mxu0 %v429
    %618 = vmatpush.bf16.msra.mxu0 %v425
    %619 = vmatmul.bf16.gmra.mxu0 %v610
    %v620 = vpop.f32.mrf.mxu0
    %v621 = vadd.f32 0.0, %v620
    %v622 = vpop.f32.mrf.mxu0
    %623 = vdwg.mxu0
    %624 = vmatpush.bf16.msra.mxu0 %v454
    %625 = vmatpush.bf16.msra.mxu0 %v450
    %626 = vmatpush.bf16.msra.mxu0 %v446
    %627 = vmatpush.bf16.msra.mxu0 %v442
    %628 = vmatpush.bf16.msra.mxu0 %v438
    %629 = vmatpush.bf16.msra.mxu0 %v434
    %630 = vmatpush.bf16.msra.mxu0 %v430
    %631 = vmatpush.bf16.msra.mxu0 %v426
    %632 = vmatmul.bf16.gmra.mxu0 %v610
    %v633 = vpop.f32.mrf.mxu0
    %v634 = vadd.f32 0.0, %v633
    %v635 = vpop.f32.mrf.mxu0
    %636 = vdwg.mxu0
    %637 = vmatpush.bf16.msra.mxu0 %v455
    %638 = vmatpush.bf16.msra.mxu0 %v451
    %639 = vmatpush.bf16.msra.mxu0 %v447
    %640 = vmatpush.bf16.msra.mxu0 %v443
    %641 = vmatpush.bf16.msra.mxu0 %v439
    %642 = vmatpush.bf16.msra.mxu0 %v435
    %643 = vmatpush.bf16.msra.mxu0 %v431
    %644 = vmatpush.bf16.msra.mxu0 %v427
    %645 = vmatmul.bf16.gmra.mxu0 %v610
    %v646 = vpop.f32.mrf.mxu0
    %v647 = vadd.f32 0.0, %v646
    %v648 = vpop.f32.mrf.mxu0
    %649 = vdwg.mxu0
    %650 = vmatpush.bf16.msra.mxu0 %v456
    %651 = vmatpush.bf16.msra.mxu0 %v452
    %652 = vmatpush.bf16.msra.mxu0 %v448
    %653 = vmatpush.bf16.msra.mxu0 %v444
    %654 = vmatpush.bf16.msra.mxu0 %v440
    %655 = vmatpush.bf16.msra.mxu0 %v436
    %656 = vmatpush.bf16.msra.mxu0 %v432
    %657 = vmatpush.bf16.msra.mxu0 %v428
    %658 = vmatmul.bf16.gmra.mxu0 %v610
    %v659 = vpop.f32.mrf.mxu0
    %v660 = vadd.f32 0.0, %v659
    %v661 = vpop.f32.mrf.mxu0
    %662 = vdwg.mxu0
    %v667 = vrot.slane %v621, 6
    %v668 = vrot.slane %v634, 6
    %v669 = vrot.slane %v647, 6
    %v670 = vrot.slane %v660, 6
    %v675 = vadd.f32 %v251, %v667
    %v676 = vadd.f32 %v265, %v668
    %v677 = vadd.f32 %v279, %v669
    %v678 = vadd.f32 %v293, %v670
    %v679 = vxor.u32 %v675, 2147483648
    %v680 = vmul.f32 %v679, 1.442695
    %v681 = vpow.pop %v680
    %v682 = vadd.f32 %v681, 1.0
    %v683 = vrcp.pop %v682
    %v684 = vmul.f32 %v682, %v683
    %v685 = vsub.f32 1.0, %v684
    %v686 = vmul.f32 %v683, %v685
    %v687 = vadd.f32 %v683, %v686
    %vm688 = vweird.f32 %v682
    %vm689 = vweird.f32 %v683
    %vm690 = vmor %vm688, %vm689
    %v691 = vsel %vm690, %v683, %v687
    %v692 = vand.u32 2147483647, %v682
    %vm693 = vcmp.eq.f32.partialorder %v692, 8.507059e+37
    %v694 = vand.u32 %v682, 2147483648
    %v695 = vor.u32 1.1754944e-38, %v694
    %v696 = vsel %vm693, %v695, %v691
    %v697 = vmul.f32 1.0, %v696
    %v698 = vxor.u32 %v676, 2147483648
    %v699 = vmul.f32 %v698, 1.442695
    %v700 = vpow.pop %v699
    %v701 = vadd.f32 %v700, 1.0
    %v702 = vrcp.pop %v701
    %v703 = vmul.f32 %v701, %v702
    %v704 = vsub.f32 1.0, %v703
    %v705 = vmul.f32 %v702, %v704
    %v706 = vadd.f32 %v702, %v705
    %vm707 = vweird.f32 %v701
    %vm708 = vweird.f32 %v702
    %vm709 = vmor %vm707, %vm708
    %v710 = vsel %vm709, %v702, %v706
    %v711 = vand.u32 2147483647, %v701
    %vm712 = vcmp.eq.f32.partialorder %v711, 8.507059e+37
    %v713 = vand.u32 %v701, 2147483648
    %v714 = vor.u32 1.1754944e-38, %v713
    %v715 = vsel %vm712, %v714, %v710
    %v716 = vmul.f32 1.0, %v715
    %v717 = vtanh.pop %v677
    %v718 = vxor.u32 %v678, 2147483648
    %v719 = vmul.f32 %v718, 1.442695
    %v720 = vpow.pop %v719
    %v721 = vadd.f32 %v720, 1.0
    %v722 = vrcp.pop %v721
    %v723 = vmul.f32 %v721, %v722
    %v724 = vsub.f32 1.0, %v723
    %v725 = vmul.f32 %v722, %v724
    %v726 = vadd.f32 %v722, %v725
    %vm727 = vweird.f32 %v721
    %vm728 = vweird.f32 %v722
    %vm729 = vmor %vm727, %vm728
    %v730 = vsel %vm729, %v722, %v726
    %v731 = vand.u32 2147483647, %v721
    %vm732 = vcmp.eq.f32.partialorder %v731, 8.507059e+37
    %v733 = vand.u32 %v721, 2147483648
    %v734 = vor.u32 1.1754944e-38, %v733
    %v735 = vsel %vm732, %v734, %v730
    %v736 = vmul.f32 1.0, %v735
    %v738 = vrot.slane %v605, 6
    %v740 = vmul.f32 %v716, %v738
    %v741 = vmul.f32 %v697, %v717
    %v742 = vadd.f32 %v740, %v741
    %v743 = vtanh.pop %v742
    %v744 = vmul.f32 %v736, %v743
    %745 = vst [vmem:[#allocation2] sm:$0xc] %v744
    %746 = vst [vmem:[#allocation3 + $0xa] sm:$0xc] %v744
    %v747 = vpack.c.bf16 %v744, %v744
    %v749 = vrot.slane %v747, 1
    %751 = vmatpush.bf16.msra.mxu0 %v453
    %752 = vmatpush.bf16.msra.mxu0 %v449
    %753 = vmatpush.bf16.msra.mxu0 %v445
    %754 = vmatpush.bf16.msra.mxu0 %v441
    %755 = vmatpush.bf16.msra.mxu0 %v437
    %756 = vmatpush.bf16.msra.mxu0 %v433
    %757 = vmatpush.bf16.msra.mxu0 %v429
    %758 = vmatpush.bf16.msra.mxu0 %v425
    %759 = vmatmul.bf16.gmra.mxu0 %v749
    %v760 = vpop.f32.mrf.mxu0
    %v761 = vadd.f32 0.0, %v760
    %v762 = vpop.f32.mrf.mxu0
    %763 = vdwg.mxu0
    %764 = vmatpush.bf16.msra.mxu0 %v454
    %765 = vmatpush.bf16.msra.mxu0 %v450
    %766 = vmatpush.bf16.msra.mxu0 %v446
    %767 = vmatpush.bf16.msra.mxu0 %v442
    %768 = vmatpush.bf16.msra.mxu0 %v438
    %769 = vmatpush.bf16.msra.mxu0 %v434
    %770 = vmatpush.bf16.msra.mxu0 %v430
    %771 = vmatpush.bf16.msra.mxu0 %v426
    %772 = vmatmul.bf16.gmra.mxu0 %v749
    %v773 = vpop.f32.mrf.mxu0
    %v774 = vadd.f32 0.0, %v773
    %v775 = vpop.f32.mrf.mxu0
    %776 = vdwg.mxu0
    %777 = vmatpush.bf16.msra.mxu0 %v455
    %778 = vmatpush.bf16.msra.mxu0 %v451
    %779 = vmatpush.bf16.msra.mxu0 %v447
    %780 = vmatpush.bf16.msra.mxu0 %v443
    %781 = vmatpush.bf16.msra.mxu0 %v439
    %782 = vmatpush.bf16.msra.mxu0 %v435
    %783 = vmatpush.bf16.msra.mxu0 %v431
    %784 = vmatpush.bf16.msra.mxu0 %v427
    %785 = vmatmul.bf16.gmra.mxu0 %v749
    %v786 = vpop.f32.mrf.mxu0
    %v787 = vadd.f32 0.0, %v786
    %v788 = vpop.f32.mrf.mxu0
    %789 = vdwg.mxu0
    %790 = vmatpush.bf16.msra.mxu0 %v456
    %791 = vmatpush.bf16.msra.mxu0 %v452
    %792 = vmatpush.bf16.msra.mxu0 %v448
    %793 = vmatpush.bf16.msra.mxu0 %v444
    %794 = vmatpush.bf16.msra.mxu0 %v440
    %795 = vmatpush.bf16.msra.mxu0 %v436
    %796 = vmatpush.bf16.msra.mxu0 %v432
    %797 = vmatpush.bf16.msra.mxu0 %v428
    %798 = vmatmul.bf16.gmra.mxu0 %v749
    %v799 = vpop.f32.mrf.mxu0
    %v800 = vadd.f32 0.0, %v799
    %v801 = vpop.f32.mrf.mxu0
    %802 = vdwg.mxu0
    %v807 = vrot.slane %v761, 4
    %v808 = vrot.slane %v774, 4
    %v809 = vrot.slane %v787, 4
    %v810 = vrot.slane %v800, 4
    %v815 = vadd.f32 %v251, %v807
    %v816 = vadd.f32 %v265, %v808
    %v817 = vadd.f32 %v279, %v809
    %v818 = vadd.f32 %v293, %v810
    %v819 = vxor.u32 %v815, 2147483648
    %v820 = vmul.f32 %v819, 1.442695
    %v821 = vpow.pop %v820
    %v822 = vadd.f32 %v821, 1.0
    %v823 = vrcp.pop %v822
    %v824 = vmul.f32 %v822, %v823
    %v825 = vsub.f32 1.0, %v824
    %v826 = vmul.f32 %v823, %v825
    %v827 = vadd.f32 %v823, %v826
    %vm828 = vweird.f32 %v822
    %vm829 = vweird.f32 %v823
    %vm830 = vmor %vm828, %vm829
    %v831 = vsel %vm830, %v823, %v827
    %v832 = vand.u32 2147483647, %v822
    %vm833 = vcmp.eq.f32.partialorder %v832, 8.507059e+37
    %v834 = vand.u32 %v822, 2147483648
    %v835 = vor.u32 1.1754944e-38, %v834
    %v836 = vsel %vm833, %v835, %v831
    %v837 = vmul.f32 1.0, %v836
    %v838 = vxor.u32 %v816, 2147483648
    %v839 = vmul.f32 %v838, 1.442695
    %v840 = vpow.pop %v839
    %v841 = vadd.f32 %v840, 1.0
    %v842 = vrcp.pop %v841
    %v843 = vmul.f32 %v841, %v842
    %v844 = vsub.f32 1.0, %v843
    %v845 = vmul.f32 %v842, %v844
    %v846 = vadd.f32 %v842, %v845
    %vm847 = vweird.f32 %v841
    %vm848 = vweird.f32 %v842
    %vm849 = vmor %vm847, %vm848
    %v850 = vsel %vm849, %v842, %v846
    %v851 = vand.u32 2147483647, %v841
    %vm852 = vcmp.eq.f32.partialorder %v851, 8.507059e+37
    %v853 = vand.u32 %v841, 2147483648
    %v854 = vor.u32 1.1754944e-38, %v853
    %v855 = vsel %vm852, %v854, %v850
    %v856 = vmul.f32 1.0, %v855
    %v857 = vtanh.pop %v817
    %v858 = vxor.u32 %v818, 2147483648
    %v859 = vmul.f32 %v858, 1.442695
    %v860 = vpow.pop %v859
    %v861 = vadd.f32 %v860, 1.0
    %v862 = vrcp.pop %v861
    %v863 = vmul.f32 %v861, %v862
    %v864 = vsub.f32 1.0, %v863
    %v865 = vmul.f32 %v862, %v864
    %v866 = vadd.f32 %v862, %v865
    %vm867 = vweird.f32 %v861
    %vm868 = vweird.f32 %v862
    %vm869 = vmor %vm867, %vm868
    %v870 = vsel %vm869, %v862, %v866
    %v871 = vand.u32 2147483647, %v861
    %vm872 = vcmp.eq.f32.partialorder %v871, 8.507059e+37
    %v873 = vand.u32 %v861, 2147483648
    %v874 = vor.u32 1.1754944e-38, %v873
    %v875 = vsel %vm872, %v874, %v870
    %v876 = vmul.f32 1.0, %v875
    %v878 = vrot.slane %v742, 6
    %v880 = vmul.f32 %v856, %v878
    %v881 = vmul.f32 %v837, %v857
    %v882 = vadd.f32 %v880, %v881
    %v883 = vtanh.pop %v882
    %v884 = vmul.f32 %v876, %v883
    %885 = vst [vmem:[#allocation2] sm:$0x30] %v884
    %886 = vst [vmem:[#allocation3 + $0x6] sm:$0x30] %v884
    %v887 = vpack.c.bf16 %v884, %v884
    %v889 = vrot.slane %v887, 2
    %891 = vmatpush.bf16.msra.mxu0 %v453
    %892 = vmatpush.bf16.msra.mxu0 %v449
    %893 = vmatpush.bf16.msra.mxu0 %v445
    %894 = vmatpush.bf16.msra.mxu0 %v441
    %895 = vmatpush.bf16.msra.mxu0 %v437
    %896 = vmatpush.bf16.msra.mxu0 %v433
    %897 = vmatpush.bf16.msra.mxu0 %v429
    %898 = vmatpush.bf16.msra.mxu0 %v425
    %899 = vmatmul.bf16.gmra.mxu0 %v889
    %v900 = vpop.f32.mrf.mxu0
    %v901 = vadd.f32 0.0, %v900
    %v902 = vpop.f32.mrf.mxu0
    %903 = vdwg.mxu0
    %904 = vmatpush.bf16.msra.mxu0 %v454
    %905 = vmatpush.bf16.msra.mxu0 %v450
    %906 = vmatpush.bf16.msra.mxu0 %v446
    %907 = vmatpush.bf16.msra.mxu0 %v442
    %908 = vmatpush.bf16.msra.mxu0 %v438
    %909 = vmatpush.bf16.msra.mxu0 %v434
    %910 = vmatpush.bf16.msra.mxu0 %v430
    %911 = vmatpush.bf16.msra.mxu0 %v426
    %912 = vmatmul.bf16.gmra.mxu0 %v889
    %v913 = vpop.f32.mrf.mxu0
    %v914 = vadd.f32 0.0, %v913
    %v915 = vpop.f32.mrf.mxu0
    %916 = vdwg.mxu0
    %917 = vmatpush.bf16.msra.mxu0 %v455
    %918 = vmatpush.bf16.msra.mxu0 %v451
    %919 = vmatpush.bf16.msra.mxu0 %v447
    %920 = vmatpush.bf16.msra.mxu0 %v443
    %921 = vmatpush.bf16.msra.mxu0 %v439
    %922 = vmatpush.bf16.msra.mxu0 %v435
    %923 = vmatpush.bf16.msra.mxu0 %v431
    %924 = vmatpush.bf16.msra.mxu0 %v427
    %925 = vmatmul.bf16.gmra.mxu0 %v889
    %v926 = vpop.f32.mrf.mxu0
    %v927 = vadd.f32 0.0, %v926
    %v928 = vpop.f32.mrf.mxu0
    %929 = vdwg.mxu0
    %930 = vmatpush.bf16.msra.mxu0 %v456
    %931 = vmatpush.bf16.msra.mxu0 %v452
    %932 = vmatpush.bf16.msra.mxu0 %v448
    %933 = vmatpush.bf16.msra.mxu0 %v444
    %934 = vmatpush.bf16.msra.mxu0 %v440
    %935 = vmatpush.bf16.msra.mxu0 %v436
    %936 = vmatpush.bf16.msra.mxu0 %v432
    %937 = vmatpush.bf16.msra.mxu0 %v428
    %938 = vmatmul.bf16.gmra.mxu0 %v889
    %v939 = vpop.f32.mrf.mxu0
    %v940 = vadd.f32 0.0, %v939
    %v941 = vpop.f32.mrf.mxu0
    %942 = vdwg.mxu0
    %v947 = vrot.slane %v901, 2
    %v948 = vrot.slane %v914, 2
    %v949 = vrot.slane %v927, 2
    %v950 = vrot.slane %v940, 2
    %v955 = vadd.f32 %v251, %v947
    %v956 = vadd.f32 %v265, %v948
    %v957 = vadd.f32 %v279, %v949
    %v958 = vadd.f32 %v293, %v950
    %v959 = vxor.u32 %v955, 2147483648
    %v960 = vmul.f32 %v959, 1.442695
    %v961 = vpow.pop %v960
    %v962 = vadd.f32 %v961, 1.0
    %v963 = vrcp.pop %v962
    %v964 = vmul.f32 %v962, %v963
    %v965 = vsub.f32 1.0, %v964
    %v966 = vmul.f32 %v963, %v965
    %v967 = vadd.f32 %v963, %v966
    %vm968 = vweird.f32 %v962
    %vm969 = vweird.f32 %v963
    %vm970 = vmor %vm968, %vm969
    %v971 = vsel %vm970, %v963, %v967
    %v972 = vand.u32 2147483647, %v962
    %vm973 = vcmp.eq.f32.partialorder %v972, 8.507059e+37
    %v974 = vand.u32 %v962, 2147483648
    %v975 = vor.u32 1.1754944e-38, %v974
    %v976 = vsel %vm973, %v975, %v971
    %v977 = vmul.f32 1.0, %v976
    %v978 = vxor.u32 %v956, 2147483648
    %v979 = vmul.f32 %v978, 1.442695
    %v980 = vpow.pop %v979
    %v981 = vadd.f32 %v980, 1.0
    %v982 = vrcp.pop %v981
    %v983 = vmul.f32 %v981, %v982
    %v984 = vsub.f32 1.0, %v983
    %v985 = vmul.f32 %v982, %v984
    %v986 = vadd.f32 %v982, %v985
    %vm987 = vweird.f32 %v981
    %vm988 = vweird.f32 %v982
    %vm989 = vmor %vm987, %vm988
    %v990 = vsel %vm989, %v982, %v986
    %v991 = vand.u32 2147483647, %v981
    %vm992 = vcmp.eq.f32.partialorder %v991, 8.507059e+37
    %v993 = vand.u32 %v981, 2147483648
    %v994 = vor.u32 1.1754944e-38, %v993
    %v995 = vsel %vm992, %v994, %v990
    %v996 = vmul.f32 1.0, %v995
    %v997 = vtanh.pop %v957
    %v998 = vxor.u32 %v958, 2147483648
    %v999 = vmul.f32 %v998, 1.442695
    %v1000 = vpow.pop %v999
    %v1001 = vadd.f32 %v1000, 1.0
    %v1002 = vrcp.pop %v1001
    %v1003 = vmul.f32 %v1001, %v1002
    %v1004 = vsub.f32 1.0, %v1003
    %v1005 = vmul.f32 %v1002, %v1004
    %v1006 = vadd.f32 %v1002, %v1005
    %vm1007 = vweird.f32 %v1001
    %vm1008 = vweird.f32 %v1002
    %vm1009 = vmor %vm1007, %vm1008
    %v1010 = vsel %vm1009, %v1002, %v1006
    %v1011 = vand.u32 2147483647, %v1001
    %vm1012 = vcmp.eq.f32.partialorder %v1011, 8.507059e+37
    %v1013 = vand.u32 %v1001, 2147483648
    %v1014 = vor.u32 1.1754944e-38, %v1013
    %v1015 = vsel %vm1012, %v1014, %v1010
    %v1016 = vmul.f32 1.0, %v1015
    %v1018 = vrot.slane %v882, 6
    %v1020 = vmul.f32 %v996, %v1018
    %v1021 = vmul.f32 %v977, %v997
    %v1022 = vadd.f32 %v1020, %v1021
    %v1023 = vtanh.pop %v1022
    %v1024 = vmul.f32 %v1016, %v1023
    %1025 = vst [vmem:[#allocation2] sm:$0xc0] %v1024
    %1026 = vst [vmem:[#allocation3 + $0x2] sm:$0xc0] %v1024
    %v1027 = vpack.c.bf16 %v1024, %v1024
    %v1029 = vrot.slane %v1027, 3
    %1031 = vmatpush.bf16.msra.mxu0 %v453
    %1032 = vmatpush.bf16.msra.mxu0 %v449
    %1033 = vmatpush.bf16.msra.mxu0 %v445
    %1034 = vmatpush.bf16.msra.mxu0 %v441
    %1035 = vmatpush.bf16.msra.mxu0 %v437
    %1036 = vmatpush.bf16.msra.mxu0 %v433
    %1037 = vmatpush.bf16.msra.mxu0 %v429
    %1038 = vmatpush.bf16.msra.mxu0 %v425
    %1039 = vmatmul.bf16.gmra.mxu0 %v1029
    %v1040 = vpop.f32.mrf.mxu0
    %v1041 = vadd.f32 0.0, %v1040
    %v1042 = vpop.f32.mrf.mxu0
    %1043 = vdwg.mxu0
    %1044 = vmatpush.bf16.msra.mxu0 %v454
    %1045 = vmatpush.bf16.msra.mxu0 %v450
    %1046 = vmatpush.bf16.msra.mxu0 %v446
    %1047 = vmatpush.bf16.msra.mxu0 %v442
    %1048 = vmatpush.bf16.msra.mxu0 %v438
    %1049 = vmatpush.bf16.msra.mxu0 %v434
    %1050 = vmatpush.bf16.msra.mxu0 %v430
    %1051 = vmatpush.bf16.msra.mxu0 %v426
    %1052 = vmatmul.bf16.gmra.mxu0 %v1029
    %v1053 = vpop.f32.mrf.mxu0
    %v1054 = vadd.f32 0.0, %v1053
    %v1055 = vpop.f32.mrf.mxu0
    %1056 = vdwg.mxu0
    %1057 = vmatpush.bf16.msra.mxu0 %v455
    %1058 = vmatpush.bf16.msra.mxu0 %v451
    %1059 = vmatpush.bf16.msra.mxu0 %v447
    %1060 = vmatpush.bf16.msra.mxu0 %v443
    %1061 = vmatpush.bf16.msra.mxu0 %v439
    %1062 = vmatpush.bf16.msra.mxu0 %v435
    %1063 = vmatpush.bf16.msra.mxu0 %v431
    %1064 = vmatpush.bf16.msra.mxu0 %v427
    %1065 = vmatmul.bf16.gmra.mxu0 %v1029
    %v1066 = vpop.f32.mrf.mxu0
    %v1067 = vadd.f32 0.0, %v1066
    %v1068 = vpop.f32.mrf.mxu0
    %1069 = vdwg.mxu0
    %1070 = vmatpush.bf16.msra.mxu0 %v456
    %1071 = vmatpush.bf16.msra.mxu0 %v452
    %1072 = vmatpush.bf16.msra.mxu0 %v448
    %1073 = vmatpush.bf16.msra.mxu0 %v444
    %1074 = vmatpush.bf16.msra.mxu0 %v440
    %1075 = vmatpush.bf16.msra.mxu0 %v436
    %1076 = vmatpush.bf16.msra.mxu0 %v432
    %1077 = vmatpush.bf16.msra.mxu0 %v428
    %1078 = vmatmul.bf16.gmra.mxu0 %v1029
    %v1079 = vpop.f32.mrf.mxu0
    %v1080 = vadd.f32 0.0, %v1079
    %v1081 = vpop.f32.mrf.mxu0
    %1082 = vdwg.mxu0
    %v1083 = vadd.f32 %v253, %v1041
    %v1084 = vadd.f32 %v267, %v1054
    %v1085 = vadd.f32 %v281, %v1067
    %v1086 = vadd.f32 %v295, %v1080
    %v1087 = vxor.u32 %v1083, 2147483648
    %v1088 = vmul.f32 %v1087, 1.442695
    %v1089 = vpow.pop %v1088
    %v1090 = vadd.f32 %v1089, 1.0
    %v1091 = vrcp.pop %v1090
    %v1092 = vmul.f32 %v1090, %v1091
    %v1093 = vsub.f32 1.0, %v1092
    %v1094 = vmul.f32 %v1091, %v1093
    %v1095 = vadd.f32 %v1091, %v1094
    %vm1096 = vweird.f32 %v1090
    %vm1097 = vweird.f32 %v1091
    %vm1098 = vmor %vm1096, %vm1097
    %v1099 = vsel %vm1098, %v1091, %v1095
    %v1100 = vand.u32 2147483647, %v1090
    %vm1101 = vcmp.eq.f32.partialorder %v1100, 8.507059e+37
    %v1102 = vand.u32 %v1090, 2147483648
    %v1103 = vor.u32 1.1754944e-38, %v1102
    %v1104 = vsel %vm1101, %v1103, %v1099
    %v1105 = vmul.f32 1.0, %v1104
    %v1106 = vxor.u32 %v1084, 2147483648
    %v1107 = vmul.f32 %v1106, 1.442695
    %v1108 = vpow.pop %v1107
    %v1109 = vadd.f32 %v1108, 1.0
    %v1110 = vrcp.pop %v1109
    %v1111 = vmul.f32 %v1109, %v1110
    %v1112 = vsub.f32 1.0, %v1111
    %v1113 = vmul.f32 %v1110, %v1112
    %v1114 = vadd.f32 %v1110, %v1113
    %vm1115 = vweird.f32 %v1109
    %vm1116 = vweird.f32 %v1110
    %vm1117 = vmor %vm1115, %vm1116
    %v1118 = vsel %vm1117, %v1110, %v1114
    %v1119 = vand.u32 2147483647, %v1109
    %vm1120 = vcmp.eq.f32.partialorder %v1119, 8.507059e+37
    %v1121 = vand.u32 %v1109, 2147483648
    %v1122 = vor.u32 1.1754944e-38, %v1121
    %v1123 = vsel %vm1120, %v1122, %v1118
    %v1124 = vmul.f32 1.0, %v1123
    %v1125 = vtanh.pop %v1085
    %v1126 = vxor.u32 %v1086, 2147483648
    %v1127 = vmul.f32 %v1126, 1.442695
    %v1128 = vpow.pop %v1127
    %v1129 = vadd.f32 %v1128, 1.0
    %v1130 = vrcp.pop %v1129
    %v1131 = vmul.f32 %v1129, %v1130
    %v1132 = vsub.f32 1.0, %v1131
    %v1133 = vmul.f32 %v1130, %v1132
    %v1134 = vadd.f32 %v1130, %v1133
    %vm1135 = vweird.f32 %v1129
    %vm1136 = vweird.f32 %v1130
    %vm1137 = vmor %vm1135, %vm1136
    %v1138 = vsel %vm1137, %v1130, %v1134
    %v1139 = vand.u32 2147483647, %v1129
    %vm1140 = vcmp.eq.f32.partialorder %v1139, 8.507059e+37
    %v1141 = vand.u32 %v1129, 2147483648
    %v1142 = vor.u32 1.1754944e-38, %v1141
    %v1143 = vsel %vm1140, %v1142, %v1138
    %v1144 = vmul.f32 1.0, %v1143
    %v1146 = vrot.slane %v1022, 6
    %v1148 = vmul.f32 %v1124, %v1146
    %v1149 = vmul.f32 %v1105, %v1125
    %v1150 = vadd.f32 %v1148, %v1149
    %v1151 = vtanh.pop %v1150
    %v1152 = vmul.f32 %v1144, %v1151
    %1153 = vst [vmem:[#allocation2 + $0x8] sm:$0x3] %v1152
    %1154 = vst [vmem:[#allocation3 + $0x6] sm:$0x3] %v1152
    %v1155 = vpack.c.bf16 %v1152, %v1152
    %1156 = vmatpush.bf16.msra.mxu0 %v453
    %1157 = vmatpush.bf16.msra.mxu0 %v449
    %1158 = vmatpush.bf16.msra.mxu0 %v445
    %1159 = vmatpush.bf16.msra.mxu0 %v441
    %1160 = vmatpush.bf16.msra.mxu0 %v437
    %1161 = vmatpush.bf16.msra.mxu0 %v433
    %1162 = vmatpush.bf16.msra.mxu0 %v429
    %1163 = vmatpush.bf16.msra.mxu0 %v425
    %1164 = vmatmul.bf16.gmra.mxu0 %v1155
    %v1165 = vpop.f32.mrf.mxu0
    %v1166 = vadd.f32 0.0, %v1165
    %v1167 = vpop.f32.mrf.mxu0
    %1168 = vdwg.mxu0
    %1169 = vmatpush.bf16.msra.mxu0 %v454
    %1170 = vmatpush.bf16.msra.mxu0 %v450
    %1171 = vmatpush.bf16.msra.mxu0 %v446
    %1172 = vmatpush.bf16.msra.mxu0 %v442
    %1173 = vmatpush.bf16.msra.mxu0 %v438
    %1174 = vmatpush.bf16.msra.mxu0 %v434
    %1175 = vmatpush.bf16.msra.mxu0 %v430
    %1176 = vmatpush.bf16.msra.mxu0 %v426
    %1177 = vmatmul.bf16.gmra.mxu0 %v1155
    %v1178 = vpop.f32.mrf.mxu0
    %v1179 = vadd.f32 0.0, %v1178
    %v1180 = vpop.f32.mrf.mxu0
    %1181 = vdwg.mxu0
    %1182 = vmatpush.bf16.msra.mxu0 %v455
    %1183 = vmatpush.bf16.msra.mxu0 %v451
    %1184 = vmatpush.bf16.msra.mxu0 %v447
    %1185 = vmatpush.bf16.msra.mxu0 %v443
    %1186 = vmatpush.bf16.msra.mxu0 %v439
    %1187 = vmatpush.bf16.msra.mxu0 %v435
    %1188 = vmatpush.bf16.msra.mxu0 %v431
    %1189 = vmatpush.bf16.msra.mxu0 %v427
    %1190 = vmatmul.bf16.gmra.mxu0 %v1155
    %v1191 = vpop.f32.mrf.mxu0
    %v1192 = vadd.f32 0.0, %v1191
    %v1193 = vpop.f32.mrf.mxu0
    %1194 = vdwg.mxu0
    %1195 = vmatpush.bf16.msra.mxu0 %v456
    %1196 = vmatpush.bf16.msra.mxu0 %v452
    %1197 = vmatpush.bf16.msra.mxu0 %v448
    %1198 = vmatpush.bf16.msra.mxu0 %v444
    %1199 = vmatpush.bf16.msra.mxu0 %v440
    %1200 = vmatpush.bf16.msra.mxu0 %v436
    %1201 = vmatpush.bf16.msra.mxu0 %v432
    %1202 = vmatpush.bf16.msra.mxu0 %v428
    %1203 = vmatmul.bf16.gmra.mxu0 %v1155
    %v1204 = vpop.f32.mrf.mxu0
    %v1205 = vadd.f32 0.0, %v1204
    %v1206 = vpop.f32.mrf.mxu0
    %1207 = vdwg.mxu0
    %v1212 = vrot.slane %v1166, 6
    %v1213 = vrot.slane %v1179, 6
    %v1214 = vrot.slane %v1192, 6
    %v1215 = vrot.slane %v1205, 6
    %v1220 = vadd.f32 %v253, %v1212
    %v1221 = vadd.f32 %v267, %v1213
    %v1222 = vadd.f32 %v281, %v1214
    %v1223 = vadd.f32 %v295, %v1215
    %v1224 = vxor.u32 %v1220, 2147483648
    %v1225 = vmul.f32 %v1224, 1.442695
    %v1226 = vpow.pop %v1225
    %v1227 = vadd.f32 %v1226, 1.0
    %v1228 = vrcp.pop %v1227
    %v1229 = vmul.f32 %v1227, %v1228
    %v1230 = vsub.f32 1.0, %v1229
    %v1231 = vmul.f32 %v1228, %v1230
    %v1232 = vadd.f32 %v1228, %v1231
    %vm1233 = vweird.f32 %v1227
    %vm1234 = vweird.f32 %v1228
    %vm1235 = vmor %vm1233, %vm1234
    %v1236 = vsel %vm1235, %v1228, %v1232
    %v1237 = vand.u32 2147483647, %v1227
    %vm1238 = vcmp.eq.f32.partialorder %v1237, 8.507059e+37
    %v1239 = vand.u32 %v1227, 2147483648
    %v1240 = vor.u32 1.1754944e-38, %v1239
    %v1241 = vsel %vm1238, %v1240, %v1236
    %v1242 = vmul.f32 1.0, %v1241
    %v1243 = vxor.u32 %v1221, 2147483648
    %v1244 = vmul.f32 %v1243, 1.442695
    %v1245 = vpow.pop %v1244
    %v1246 = vadd.f32 %v1245, 1.0
    %v1247 = vrcp.pop %v1246
    %v1248 = vmul.f32 %v1246, %v1247
    %v1249 = vsub.f32 1.0, %v1248
    %v1250 = vmul.f32 %v1247, %v1249
    %v1251 = vadd.f32 %v1247, %v1250
    %vm1252 = vweird.f32 %v1246
    %vm1253 = vweird.f32 %v1247
    %vm1254 = vmor %vm1252, %vm1253
    %v1255 = vsel %vm1254, %v1247, %v1251
    %v1256 = vand.u32 2147483647, %v1246
    %vm1257 = vcmp.eq.f32.partialorder %v1256, 8.507059e+37
    %v1258 = vand.u32 %v1246, 2147483648
    %v1259 = vor.u32 1.1754944e-38, %v1258
    %v1260 = vsel %vm1257, %v1259, %v1255
    %v1261 = vmul.f32 1.0, %v1260
    %v1262 = vtanh.pop %v1222
    %v1263 = vxor.u32 %v1223, 2147483648
    %v1264 = vmul.f32 %v1263, 1.442695
    %v1265 = vpow.pop %v1264
    %v1266 = vadd.f32 %v1265, 1.0
    %v1267 = vrcp.pop %v1266
    %v1268 = vmul.f32 %v1266, %v1267
    %v1269 = vsub.f32 1.0, %v1268
    %v1270 = vmul.f32 %v1267, %v1269
    %v1271 = vadd.f32 %v1267, %v1270
    %vm1272 = vweird.f32 %v1266
    %vm1273 = vweird.f32 %v1267
    %vm1274 = vmor %vm1272, %vm1273
    %v1275 = vsel %vm1274, %v1267, %v1271
    %v1276 = vand.u32 2147483647, %v1266
    %vm1277 = vcmp.eq.f32.partialorder %v1276, 8.507059e+37
    %v1278 = vand.u32 %v1266, 2147483648
    %v1279 = vor.u32 1.1754944e-38, %v1278
    %v1280 = vsel %vm1277, %v1279, %v1275
    %v1281 = vmul.f32 1.0, %v1280
    %v1283 = vrot.slane %v1150, 6
    %v1285 = vmul.f32 %v1261, %v1283
    %v1286 = vmul.f32 %v1242, %v1262
    %v1287 = vadd.f32 %v1285, %v1286
    %v1288 = vtanh.pop %v1287
    %v1289 = vmul.f32 %v1281, %v1288
    %1290 = vst [vmem:[#allocation2 + $0x8] sm:$0xc] %v1289
    %1291 = vst [vmem:[#allocation3 + $0x2] sm:$0xc] %v1289
    %v1292 = vpack.c.bf16 %v1289, %v1289
    %v1294 = vrot.slane %v1292, 1
    %1296 = vmatpush.bf16.msra.mxu0 %v453
    %1297 = vmatpush.bf16.msra.mxu0 %v449
    %1298 = vmatpush.bf16.msra.mxu0 %v445
    %1299 = vmatpush.bf16.msra.mxu0 %v441
    %1300 = vmatpush.bf16.msra.mxu0 %v437
    %1301 = vmatpush.bf16.msra.mxu0 %v433
    %1302 = vmatpush.bf16.msra.mxu0 %v429
    %1303 = vmatpush.bf16.msra.mxu0 %v425
    %1304 = vmatmul.bf16.gmra.mxu0 %v1294
    %v1305 = vpop.f32.mrf.mxu0
    %v1306 = vadd.f32 0.0, %v1305
    %v1307 = vpop.f32.mrf.mxu0
    %1308 = vdwg.mxu0
    %1309 = vmatpush.bf16.msra.mxu0 %v454
    %1310 = vmatpush.bf16.msra.mxu0 %v450
    %1311 = vmatpush.bf16.msra.mxu0 %v446
    %1312 = vmatpush.bf16.msra.mxu0 %v442
    %1313 = vmatpush.bf16.msra.mxu0 %v438
    %1314 = vmatpush.bf16.msra.mxu0 %v434
    %1315 = vmatpush.bf16.msra.mxu0 %v430
    %1316 = vmatpush.bf16.msra.mxu0 %v426
    %1317 = vmatmul.bf16.gmra.mxu0 %v1294
    %v1318 = vpop.f32.mrf.mxu0
    %v1319 = vadd.f32 0.0, %v1318
    %v1320 = vpop.f32.mrf.mxu0
    %1321 = vdwg.mxu0
    %1322 = vmatpush.bf16.msra.mxu0 %v455
    %1323 = vmatpush.bf16.msra.mxu0 %v451
    %1324 = vmatpush.bf16.msra.mxu0 %v447
    %1325 = vmatpush.bf16.msra.mxu0 %v443
    %1326 = vmatpush.bf16.msra.mxu0 %v439
    %1327 = vmatpush.bf16.msra.mxu0 %v435
    %1328 = vmatpush.bf16.msra.mxu0 %v431
    %1329 = vmatpush.bf16.msra.mxu0 %v427
    %1330 = vmatmul.bf16.gmra.mxu0 %v1294
    %v1331 = vpop.f32.mrf.mxu0
    %v1332 = vadd.f32 0.0, %v1331
    %v1333 = vpop.f32.mrf.mxu0
    %1334 = vdwg.mxu0
    %1335 = vmatpush.bf16.msra.mxu0 %v456
    %1336 = vmatpush.bf16.msra.mxu0 %v452
    %1337 = vmatpush.bf16.msra.mxu0 %v448
    %1338 = vmatpush.bf16.msra.mxu0 %v444
    %1339 = vmatpush.bf16.msra.mxu0 %v440
    %1340 = vmatpush.bf16.msra.mxu0 %v436
    %1341 = vmatpush.bf16.msra.mxu0 %v432
    %1342 = vmatpush.bf16.msra.mxu0 %v428
    %1343 = vmatmul.bf16.gmra.mxu0 %v1294
    %v1344 = vpop.f32.mrf.mxu0
    %v1345 = vadd.f32 0.0, %v1344
    %v1346 = vpop.f32.mrf.mxu0
    %1347 = vdwg.mxu0
    %v1352 = vrot.slane %v1306, 4
    %v1353 = vrot.slane %v1319, 4
    %v1354 = vrot.slane %v1332, 4
    %v1355 = vrot.slane %v1345, 4
    %v1360 = vadd.f32 %v253, %v1352
    %v1361 = vadd.f32 %v267, %v1353
    %v1362 = vadd.f32 %v281, %v1354
    %v1363 = vadd.f32 %v295, %v1355
    %v1364 = vxor.u32 %v1360, 2147483648
    %v1365 = vmul.f32 %v1364, 1.442695
    %v1366 = vpow.pop %v1365
    %v1367 = vadd.f32 %v1366, 1.0
    %v1368 = vrcp.pop %v1367
    %v1369 = vmul.f32 %v1367, %v1368
    %v1370 = vsub.f32 1.0, %v1369
    %v1371 = vmul.f32 %v1368, %v1370
    %v1372 = vadd.f32 %v1368, %v1371
    %vm1373 = vweird.f32 %v1367
    %vm1374 = vweird.f32 %v1368
    %vm1375 = vmor %vm1373, %vm1374
    %v1376 = vsel %vm1375, %v1368, %v1372
    %v1377 = vand.u32 2147483647, %v1367
    %vm1378 = vcmp.eq.f32.partialorder %v1377, 8.507059e+37
    %v1379 = vand.u32 %v1367, 2147483648
    %v1380 = vor.u32 1.1754944e-38, %v1379
    %v1381 = vsel %vm1378, %v1380, %v1376
    %v1382 = vmul.f32 1.0, %v1381
    %v1383 = vxor.u32 %v1361, 2147483648
    %v1384 = vmul.f32 %v1383, 1.442695
    %v1385 = vpow.pop %v1384
    %v1386 = vadd.f32 %v1385, 1.0
    %v1387 = vrcp.pop %v1386
    %v1388 = vmul.f32 %v1386, %v1387
    %v1389 = vsub.f32 1.0, %v1388
    %v1390 = vmul.f32 %v1387, %v1389
    %v1391 = vadd.f32 %v1387, %v1390
    %vm1392 = vweird.f32 %v1386
    %vm1393 = vweird.f32 %v1387
    %vm1394 = vmor %vm1392, %vm1393
    %v1395 = vsel %vm1394, %v1387, %v1391
    %v1396 = vand.u32 2147483647, %v1386
    %vm1397 = vcmp.eq.f32.partialorder %v1396, 8.507059e+37
    %v1398 = vand.u32 %v1386, 2147483648
    %v1399 = vor.u32 1.1754944e-38, %v1398
    %v1400 = vsel %vm1397, %v1399, %v1395
    %v1401 = vmul.f32 1.0, %v1400
    %v1402 = vtanh.pop %v1362
    %v1403 = vxor.u32 %v1363, 2147483648
    %v1404 = vmul.f32 %v1403, 1.442695
    %v1405 = vpow.pop %v1404
    %v1406 = vadd.f32 %v1405, 1.0
    %v1407 = vrcp.pop %v1406
    %v1408 = vmul.f32 %v1406, %v1407
    %v1409 = vsub.f32 1.0, %v1408
    %v1410 = vmul.f32 %v1407, %v1409
    %v1411 = vadd.f32 %v1407, %v1410
    %vm1412 = vweird.f32 %v1406
    %vm1413 = vweird.f32 %v1407
    %vm1414 = vmor %vm1412, %vm1413
    %v1415 = vsel %vm1414, %v1407, %v1411
    %v1416 = vand.u32 2147483647, %v1406
    %vm1417 = vcmp.eq.f32.partialorder %v1416, 8.507059e+37
    %v1418 = vand.u32 %v1406, 2147483648
    %v1419 = vor.u32 1.1754944e-38, %v1418
    %v1420 = vsel %vm1417, %v1419, %v1415
    %v1421 = vmul.f32 1.0, %v1420
    %v1423 = vrot.slane %v1287, 6
    %v1425 = vmul.f32 %v1401, %v1423
    %v1426 = vmul.f32 %v1382, %v1402
    %v1427 = vadd.f32 %v1425, %v1426
    %v1428 = vtanh.pop %v1427
    %v1429 = vmul.f32 %v1421, %v1428
    %1430 = vst [vmem:[#allocation2 + $0x8] sm:$0x30] %v1429
    %1431 = vst [vmem:[#allocation3 - $0x2] sm:$0x30] %v1429
    %v1432 = vpack.c.bf16 %v1429, %v1429
    %v1434 = vrot.slane %v1432, 2
    %1436 = vmatpush.bf16.msra.mxu0 %v453
    %1437 = vmatpush.bf16.msra.mxu0 %v449
    %1438 = vmatpush.bf16.msra.mxu0 %v445
    %1439 = vmatpush.bf16.msra.mxu0 %v441
    %1440 = vmatpush.bf16.msra.mxu0 %v437
    %1441 = vmatpush.bf16.msra.mxu0 %v433
    %1442 = vmatpush.bf16.msra.mxu0 %v429
    %1443 = vmatpush.bf16.msra.mxu0 %v425
    %1444 = vmatmul.bf16.gmra.mxu0 %v1434
    %v1445 = vpop.f32.mrf.mxu0
    %v1446 = vadd.f32 0.0, %v1445
    %v1447 = vpop.f32.mrf.mxu0
    %1448 = vdwg.mxu0
    %1449 = vmatpush.bf16.msra.mxu0 %v454
    %1450 = vmatpush.bf16.msra.mxu0 %v450
    %1451 = vmatpush.bf16.msra.mxu0 %v446
    %1452 = vmatpush.bf16.msra.mxu0 %v442
    %1453 = vmatpush.bf16.msra.mxu0 %v438
    %1454 = vmatpush.bf16.msra.mxu0 %v434
    %1455 = vmatpush.bf16.msra.mxu0 %v430
    %1456 = vmatpush.bf16.msra.mxu0 %v426
    %1457 = vmatmul.bf16.gmra.mxu0 %v1434
    %v1458 = vpop.f32.mrf.mxu0
    %v1459 = vadd.f32 0.0, %v1458
    %v1460 = vpop.f32.mrf.mxu0
    %1461 = vdwg.mxu0
    %1462 = vmatpush.bf16.msra.mxu0 %v455
    %1463 = vmatpush.bf16.msra.mxu0 %v451
    %1464 = vmatpush.bf16.msra.mxu0 %v447
    %1465 = vmatpush.bf16.msra.mxu0 %v443
    %1466 = vmatpush.bf16.msra.mxu0 %v439
    %1467 = vmatpush.bf16.msra.mxu0 %v435
    %1468 = vmatpush.bf16.msra.mxu0 %v431
    %1469 = vmatpush.bf16.msra.mxu0 %v427
    %1470 = vmatmul.bf16.gmra.mxu0 %v1434
    %v1471 = vpop.f32.mrf.mxu0
    %v1472 = vadd.f32 0.0, %v1471
    %v1473 = vpop.f32.mrf.mxu0
    %1474 = vdwg.mxu0
    %1475 = vmatpush.bf16.msra.mxu0 %v456
    %1476 = vmatpush.bf16.msra.mxu0 %v452
    %1477 = vmatpush.bf16.msra.mxu0 %v448
    %1478 = vmatpush.bf16.msra.mxu0 %v444
    %1479 = vmatpush.bf16.msra.mxu0 %v440
    %1480 = vmatpush.bf16.msra.mxu0 %v436
    %1481 = vmatpush.bf16.msra.mxu0 %v432
    %1482 = vmatpush.bf16.msra.mxu0 %v428
    %1483 = vmatmul.bf16.gmra.mxu0 %v1434
    %v1484 = vpop.f32.mrf.mxu0
    %v1485 = vadd.f32 0.0, %v1484
    %v1486 = vpop.f32.mrf.mxu0
    %1487 = vdwg.mxu0
    %v1492 = vrot.slane %v1446, 2
    %v1493 = vrot.slane %v1459, 2
    %v1494 = vrot.slane %v1472, 2
    %v1495 = vrot.slane %v1485, 2
    %v1500 = vadd.f32 %v253, %v1492
    %v1501 = vadd.f32 %v267, %v1493
    %v1502 = vadd.f32 %v281, %v1494
    %v1503 = vadd.f32 %v295, %v1495
    %v1504 = vxor.u32 %v1500, 2147483648
    %v1505 = vmul.f32 %v1504, 1.442695
    %v1506 = vpow.pop %v1505
    %v1507 = vadd.f32 %v1506, 1.0
    %v1508 = vrcp.pop %v1507
    %v1509 = vmul.f32 %v1507, %v1508
    %v1510 = vsub.f32 1.0, %v1509
    %v1511 = vmul.f32 %v1508, %v1510
    %v1512 = vadd.f32 %v1508, %v1511
    %vm1513 = vweird.f32 %v1507
    %vm1514 = vweird.f32 %v1508
    %vm1515 = vmor %vm1513, %vm1514
    %v1516 = vsel %vm1515, %v1508, %v1512
    %v1517 = vand.u32 2147483647, %v1507
    %vm1518 = vcmp.eq.f32.partialorder %v1517, 8.507059e+37
    %v1519 = vand.u32 %v1507, 2147483648
    %v1520 = vor.u32 1.1754944e-38, %v1519
    %v1521 = vsel %vm1518, %v1520, %v1516
    %v1522 = vmul.f32 1.0, %v1521
    %v1523 = vxor.u32 %v1501, 2147483648
    %v1524 = vmul.f32 %v1523, 1.442695
    %v1525 = vpow.pop %v1524
    %v1526 = vadd.f32 %v1525, 1.0
    %v1527 = vrcp.pop %v1526
    %v1528 = vmul.f32 %v1526, %v1527
    %v1529 = vsub.f32 1.0, %v1528
    %v1530 = vmul.f32 %v1527, %v1529
    %v1531 = vadd.f32 %v1527, %v1530
    %vm1532 = vweird.f32 %v1526
    %vm1533 = vweird.f32 %v1527
    %vm1534 = vmor %vm1532, %vm1533
    %v1535 = vsel %vm1534, %v1527, %v1531
    %v1536 = vand.u32 2147483647, %v1526
    %vm1537 = vcmp.eq.f32.partialorder %v1536, 8.507059e+37
    %v1538 = vand.u32 %v1526, 2147483648
    %v1539 = vor.u32 1.1754944e-38, %v1538
    %v1540 = vsel %vm1537, %v1539, %v1535
    %v1541 = vmul.f32 1.0, %v1540
    %v1542 = vtanh.pop %v1502
    %v1543 = vxor.u32 %v1503, 2147483648
    %v1544 = vmul.f32 %v1543, 1.442695
    %v1545 = vpow.pop %v1544
    %v1546 = vadd.f32 %v1545, 1.0
    %v1547 = vrcp.pop %v1546
    %v1548 = vmul.f32 %v1546, %v1547
    %v1549 = vsub.f32 1.0, %v1548
    %v1550 = vmul.f32 %v1547, %v1549
    %v1551 = vadd.f32 %v1547, %v1550
    %vm1552 = vweird.f32 %v1546
    %vm1553 = vweird.f32 %v1547
    %vm1554 = vmor %vm1552, %vm1553
    %v1555 = vsel %vm1554, %v1547, %v1551
    %v1556 = vand.u32 2147483647, %v1546
    %vm1557 = vcmp.eq.f32.partialorder %v1556, 8.507059e+37
    %v1558 = vand.u32 %v1546, 2147483648
    %v1559 = vor.u32 1.1754944e-38, %v1558
    %v1560 = vsel %vm1557, %v1559, %v1555
    %v1561 = vmul.f32 1.0, %v1560
    %v1563 = vrot.slane %v1427, 6
    %v1565 = vmul.f32 %v1541, %v1563
    %v1566 = vmul.f32 %v1522, %v1542
    %v1567 = vadd.f32 %v1565, %v1566
    %v1568 = vtanh.pop %v1567
    %v1569 = vmul.f32 %v1561, %v1568
    %1570 = vst [vmem:[#allocation2 + $0x8] sm:$0xc0] %v1569
    %1571 = vst [vmem:[#allocation3 - $0x6] sm:$0xc0] %v1569
    %v1572 = vlaneseq
    %v1573 = vand.u32 %v1572, 127
    %vm1574 = vcmp.lt.s32.totalorder %v1573, 64
    %v1575 = vld [vmem:[#allocation2] sm:$0xff]
    %v1576 = vld [vmem:[#allocation2 + $0x8] sm:$0xff]
    %v1577 = vld [vmem:[#allocation3] sm:$0xff]
    %v1578 = vld [vmem:[#allocation3 + $0x8] sm:$0xff]
    %v1579 = vsel %vm1574, %v1575, %v1577
    %v1580 = vsel %vm1574, %v1576, %v1578
    %v1581 = vpack.c.bf16 %v1580, %v1579
    %v1582 = vld [vmem:[#allocation12] sm:$0xf]
    %v1583 = vld [vmem:[#allocation12 + $0x4] sm:$0xf]
    %v1584 = vld [vmem:[#allocation12 + $0x8] sm:$0xf]
    %v1585 = vld [vmem:[#allocation12 + $0xc] sm:$0xf]
    %v1586 = vld [vmem:[#allocation12 + $0x10] sm:$0xf]
    %v1587 = vld [vmem:[#allocation12 + $0x14] sm:$0xf]
    %v1588 = vld [vmem:[#allocation12 + $0x18] sm:$0xf]
    %v1589 = vld [vmem:[#allocation12 + $0x1c] sm:$0xf]
    %v1590 = vld [vmem:[#allocation12 + $0x20] sm:$0xf]
    %v1591 = vld [vmem:[#allocation12 + $0x24] sm:$0xf]
    %v1592 = vld [vmem:[#allocation12 + $0x28] sm:$0xf]
    %v1593 = vld [vmem:[#allocation12 + $0x2c] sm:$0xf]
    %v1594 = vld [vmem:[#allocation12 + $0x30] sm:$0xf]
    %v1595 = vld [vmem:[#allocation12 + $0x34] sm:$0xf]
    %v1596 = vld [vmem:[#allocation12 + $0x38] sm:$0xf]
    %v1597 = vld [vmem:[#allocation12 + $0x3c] sm:$0xf]
    %v1598 = vld [vmem:[%s6] sm:$0x1]
    %v1600 = vperm.slane %v1598, 0
    %v1618 = vunpack.c.l.b16 %v1582
    %v1619 = vunpack.c.l.b16 %v1583
    %v1620 = vunpack.c.l.b16 %v1584
    %v1621 = vunpack.c.l.b16 %v1585
    %v1622 = vunpack.c.l.b16 %v1586
    %v1623 = vunpack.c.l.b16 %v1587
    %v1624 = vunpack.c.l.b16 %v1588
    %v1625 = vunpack.c.l.b16 %v1589
    %v1626 = vunpack.c.l.b16 %v1590
    %v1627 = vunpack.c.l.b16 %v1591
    %v1628 = vunpack.c.l.b16 %v1592
    %v1629 = vunpack.c.l.b16 %v1593
    %v1630 = vunpack.c.l.b16 %v1594
    %v1631 = vunpack.c.l.b16 %v1595
    %v1632 = vunpack.c.l.b16 %v1596
    %v1633 = vunpack.c.l.b16 %v1597
    %v1634 = vpack.c.b16 %v1619, %v1618
    %v1635 = vpack.c.b16 %v1621, %v1620
    %v1636 = vpack.c.b16 %v1623, %v1622
    %v1637 = vpack.c.b16 %v1625, %v1624
    %v1638 = vpack.c.b16 %v1627, %v1626
    %v1639 = vpack.c.b16 %v1629, %v1628
    %v1640 = vpack.c.b16 %v1631, %v1630
    %v1641 = vpack.c.b16 %v1633, %v1632
    %1650 = vmatpush.bf16.msra.mxu0 %v1641
    %1651 = vmatpush.bf16.msra.mxu0 %v1640
    %1652 = vmatpush.bf16.msra.mxu0 %v1639
    %1653 = vmatpush.bf16.msra.mxu0 %v1638
    %1654 = vmatpush.bf16.msra.mxu0 %v1637
    %1655 = vmatpush.bf16.msra.mxu0 %v1636
    %1656 = vmatpush.bf16.msra.mxu0 %v1635
    %1657 = vmatpush.bf16.msra.mxu0 %v1634
    %1658 = vmatmul.bf16.gmra.mxu0 %v1581
    %v1659 = vpop.f32.mrf.mxu0
    %v1660 = vadd.f32 %v1600, %v1659
    %v1661 = vpop.f32.mrf.mxu0
    %v1662 = vadd.f32 %v1600, %v1661
    %1663 = vdwg.mxu0
    %v1664 = vtanh.pop %v1660
    %v1665 = vtanh.pop %v1662
    %v1667 = vrot.slane %v1569, 6
    %v1669 = vrot.slane %v1569, 4
    %v1671 = vrot.slane %v1569, 2
    %vm1673 = vcmask 1041408
    %v1674 = vsel %vm1673, %v1667, %v1669
    %vm1675 = vcmask 1043456
    %v1676 = vsel %vm1675, %v1674, %v1671
    %vm1677 = vcmask 1045504
    %v1678 = vsel %vm1677, %v1676, %v1569
    %v1679 = vmul.f32 %v1664, %v1678
    %v1680 = vmul.f32 %v1665, %v1678
    %1681 = vadd.xlane.f32.xlu0 %v1679
    %v1682 = vpop.xlane.xlu0 %1681
    %1683 = vadd.xlane.f32.xlu0 %v1680
    %v1684 = vpop.xlane.xlu0 %1683
    %v1685 = vmul.f32 %v1682, 0.70710677
    %v1686 = vmul.f32 %v1684, 0.70710677
    %v1687 = vrot.slane %v1685, 6
    %v1688 = vrot.slane %v1686, 6
    %v1689 = vlaneseq
    %v1690 = vshrl.u32 %v1689, 7
    %vm1691 = vcmp.lt.s32.totalorder %v1690, 2
    %v1692 = vsel %vm1691, %v1687, %v1688
    %v1693 = vsel %vm1691, %v1688, %v1687
    %v1694 = vmax.f32 %v1685, %v1693
    %v1695 = vmax.f32 %v1686, %v1692
    %v1696 = vrot.slane %v1685, 4
    %v1697 = vrot.slane %v1686, 4
    %vm1698 = vcmp.lt.s32.totalorder %v1690, 4
    %v1699 = vsel %vm1698, %v1696, %v1697
    %v1700 = vsel %vm1698, %v1697, %v1696
    %v1701 = vmax.f32 %v1694, %v1700
    %v1702 = vmax.f32 %v1695, %v1699
    %v1703 = vrot.slane %v1685, 2
    %v1704 = vrot.slane %v1686, 2
    %vm1705 = vcmp.lt.s32.totalorder %v1690, 6
    %v1706 = vsel %vm1705, %v1703, %v1704
    %v1707 = vsel %vm1705, %v1704, %v1703
    %v1708 = vmax.f32 %v1701, %v1707
    %v1709 = vmax.f32 %v1702, %v1706
    %v1710 = vmax.f32 %v1708, %v1686
    %v1711 = vmax.f32 %v1709, %v1685
    %v1712 = vmax.f32 %v1710, %v1692
    %v1713 = vmax.f32 %v1711, %v1693
    %v1714 = vmax.f32 %v1712, %v1699
    %v1715 = vmax.f32 %v1713, %v1700
    %v1716 = vmax.f32 %v1714, %v1706
    %v1717 = vmax.f32 %v1715, %v1707
    %v1718 = vsub.f32 %v1685, %v1716
    %v1719 = vsub.f32 %v1686, %v1717
    %v1720 = vmul.f32 %v1718, 1.442695
    %v1721 = vpow.pop %v1720
    %v1722 = vmul.f32 %v1719, 1.442695
    %v1723 = vpow.pop %v1722
    %v1724 = vrot.slane %v1721, 6
    %v1725 = vrot.slane %v1723, 6
    %v1726 = vsel %vm1691, %v1724, %v1725
    %v1727 = vsel %vm1691, %v1725, %v1724
    %v1728 = vadd.f32 %v1721, %v1727
    %v1729 = vadd.f32 %v1723, %v1726
    %v1730 = vrot.slane %v1721, 4
    %v1731 = vrot.slane %v1723, 4
    %v1732 = vsel %vm1698, %v1730, %v1731
    %v1733 = vsel %vm1698, %v1731, %v1730
    %v1734 = vadd.f32 %v1728, %v1733
    %v1735 = vadd.f32 %v1729, %v1732
    %v1736 = vrot.slane %v1721, 2
    %v1737 = vrot.slane %v1723, 2
    %v1738 = vsel %vm1705, %v1736, %v1737
    %v1739 = vsel %vm1705, %v1737, %v1736
    %v1740 = vadd.f32 %v1734, %v1739
    %v1741 = vadd.f32 %v1735, %v1738
    %v1742 = vadd.f32 %v1740, %v1723
    %v1743 = vadd.f32 %v1741, %v1721
    %v1744 = vadd.f32 %v1742, %v1726
    %v1745 = vadd.f32 %v1743, %v1727
    %v1746 = vadd.f32 %v1744, %v1732
    %v1747 = vadd.f32 %v1745, %v1733
    %v1748 = vadd.f32 %v1746, %v1738
    %v1749 = vadd.f32 %v1747, %v1739
    %v1750 = vrcp.pop %v1748
    %v1751 = vrcp.pop %v1749
    %v1752 = vmul.f32 %v1721, %v1750
    %v1753 = vmul.f32 %v1723, %v1751
    %v1754 = vmul.f32 %v1579, %v1752
    %v1755 = vmul.f32 %v1580, %v1753
    %1756 = vst [vmem:[#allocation19] sm:$0xff] %v1754
    %1757 = vst [vmem:[#allocation19 + $0x8] sm:$0xff] %v1755
    %v1758 = vld [vmem:[%s4] sm:$0x1]
    %v1759 = vld [vmem:[#allocation13] sm:$0xf]
    %v1760 = vld [vmem:[#allocation13 + $0x4] sm:$0xf]
    %v1761 = vld [vmem:[%s8] sm:$0x1]
    %v1763 = vperm.slane %v1761, 0
    %v1767 = vunpack.c.l.b16 %v1759
    %v1768 = vunpack.c.l.b16 %v1760
    %v1769 = vpack.c.b16 %v1768, %v1767
    %vm1771 = vcmask 130048
    %v1773 = vsel %vm1771, %v1758, 0
    %1775 = vmatpush.bf16.msra.mxu0 0
    %1776 = vmatpush.bf16.msra.mxu0 0
    %1777 = vmatpush.bf16.msra.mxu0 0
    %1778 = vmatpush.bf16.msra.mxu0 0
    %1779 = vmatpush.bf16.msra.mxu0 0
    %1780 = vmatpush.bf16.msra.mxu0 0
    %1781 = vmatpush.bf16.msra.mxu0 0
    %1782 = vmatpush.bf16.msra.mxu0 %v1769
    %1783 = vmatmul.bf16.gmra.mxu0 %v1773
    %v1784 = vpop.f32.mrf.mxu0
    %v1785 = vadd.f32 %v1763, %v1784
    %v1786 = vpop.f32.mrf.mxu0
    %1787 = vdwg.mxu0
    %v1788 = vmax.f32 %v1785, 0.0
    %v1789 = vpack.c.bf16 %v1788, %v1788
    %v1790 = vld [vmem:[#allocation15] sm:$0xf]
    %v1791 = vld [vmem:[#allocation15 + $0x4] sm:$0xf]
    %v1792 = vld [vmem:[#allocation15 + $0x8] sm:$0xf]
    %v1793 = vld [vmem:[#allocation15 + $0xc] sm:$0xf]
    %v1794 = vld [vmem:[#allocation15 + $0x10] sm:$0xf]
    %v1795 = vld [vmem:[#allocation15 + $0x14] sm:$0xf]
    %v1796 = vld [vmem:[#allocation15 + $0x18] sm:$0xf]
    %v1797 = vld [vmem:[#allocation15 + $0x1c] sm:$0xf]
    %v1798 = vld [vmem:[#allocation15 + $0x20] sm:$0xf]
    %v1799 = vld [vmem:[#allocation15 + $0x24] sm:$0xf]
    %v1800 = vld [vmem:[#allocation15 + $0x28] sm:$0xf]
    %v1801 = vld [vmem:[#allocation15 + $0x2c] sm:$0xf]
    %v1802 = vld [vmem:[#allocation15 + $0x30] sm:$0xf]
    %v1803 = vld [vmem:[#allocation15 + $0x34] sm:$0xf]
    %v1804 = vld [vmem:[#allocation15 + $0x38] sm:$0xf]
    %v1805 = vld [vmem:[#allocation15 + $0x3c] sm:$0xf]
    %v1806 = vld [vmem:[%s10] sm:$0x1]
    %v1808 = vperm.slane %v1806, 0
    %v1826 = vunpack.c.l.b16 %v1790
    %v1827 = vunpack.c.l.b16 %v1791
    %v1828 = vunpack.c.l.b16 %v1792
    %v1829 = vunpack.c.l.b16 %v1793
    %v1830 = vunpack.c.l.b16 %v1794
    %v1831 = vunpack.c.l.b16 %v1795
    %v1832 = vunpack.c.l.b16 %v1796
    %v1833 = vunpack.c.l.b16 %v1797
    %v1834 = vunpack.c.l.b16 %v1798
    %v1835 = vunpack.c.l.b16 %v1799
    %v1836 = vunpack.c.l.b16 %v1800
    %v1837 = vunpack.c.l.b16 %v1801
    %v1838 = vunpack.c.l.b16 %v1802
    %v1839 = vunpack.c.l.b16 %v1803
    %v1840 = vunpack.c.l.b16 %v1804
    %v1841 = vunpack.c.l.b16 %v1805
    %v1842 = vpack.c.b16 %v1827, %v1826
    %v1843 = vpack.c.b16 %v1829, %v1828
    %v1844 = vpack.c.b16 %v1831, %v1830
    %v1845 = vpack.c.b16 %v1833, %v1832
    %v1846 = vpack.c.b16 %v1835, %v1834
    %v1847 = vpack.c.b16 %v1837, %v1836
    %v1848 = vpack.c.b16 %v1839, %v1838
    %v1849 = vpack.c.b16 %v1841, %v1840
    %1858 = vmatpush.bf16.msra.mxu0 %v1849
    %1859 = vmatpush.bf16.msra.mxu0 %v1848
    %1860 = vmatpush.bf16.msra.mxu0 %v1847
    %1861 = vmatpush.bf16.msra.mxu0 %v1846
    %1862 = vmatpush.bf16.msra.mxu0 %v1845
    %1863 = vmatpush.bf16.msra.mxu0 %v1844
    %1864 = vmatpush.bf16.msra.mxu0 %v1843
    %1865 = vmatpush.bf16.msra.mxu0 %v1842
    %1866 = vmatmul.bf16.gmra.mxu0 %v1789
    %v1867 = vpop.f32.mrf.mxu0
    %v1868 = vadd.f32 %v1808, %v1867
    %v1869 = vpop.f32.mrf.mxu0
    %1870 = vdwg.mxu0
    %v1871 = vmax.f32 %v1868, 0.0
    %v1872 = vpack.c.bf16 %v1871, %v1871
    %v1873 = vld [vmem:[#allocation16] sm:$0xf]
    %v1874 = vld [vmem:[#allocation16 + $0x4] sm:$0xf]
    %v1875 = vld [vmem:[#allocation16 + $0x8] sm:$0xf]
    %v1876 = vld [vmem:[#allocation16 + $0xc] sm:$0xf]
    %v1877 = vld [vmem:[#allocation16 + $0x10] sm:$0xf]
    %v1878 = vld [vmem:[#allocation16 + $0x14] sm:$0xf]
    %v1879 = vld [vmem:[#allocation16 + $0x18] sm:$0xf]
    %v1880 = vld [vmem:[#allocation16 + $0x1c] sm:$0xf]
    %v1881 = vld [vmem:[#allocation16 + $0x20] sm:$0xf]
    %v1882 = vld [vmem:[#allocation16 + $0x24] sm:$0xf]
    %v1883 = vld [vmem:[#allocation16 + $0x28] sm:$0xf]
    %v1884 = vld [vmem:[#allocation16 + $0x2c] sm:$0xf]
    %v1885 = vld [vmem:[#allocation16 + $0x30] sm:$0xf]
    %v1886 = vld [vmem:[#allocation16 + $0x34] sm:$0xf]
    %v1887 = vld [vmem:[#allocation16 + $0x38] sm:$0xf]
    %v1888 = vld [vmem:[#allocation16 + $0x3c] sm:$0xf]
    %v1889 = vld [vmem:[%s12] sm:$0x1]
    %v1891 = vperm.slane %v1889, 0
    %v1909 = vunpack.c.l.b16 %v1873
    %v1910 = vunpack.c.l.b16 %v1874
    %v1911 = vunpack.c.l.b16 %v1875
    %v1912 = vunpack.c.l.b16 %v1876
    %v1913 = vunpack.c.l.b16 %v1877
    %v1914 = vunpack.c.l.b16 %v1878
    %v1915 = vunpack.c.l.b16 %v1879
    %v1916 = vunpack.c.l.b16 %v1880
    %v1917 = vunpack.c.l.b16 %v1881
    %v1918 = vunpack.c.l.b16 %v1882
    %v1919 = vunpack.c.l.b16 %v1883
    %v1920 = vunpack.c.l.b16 %v1884
    %v1921 = vunpack.c.l.b16 %v1885
    %v1922 = vunpack.c.l.b16 %v1886
    %v1923 = vunpack.c.l.b16 %v1887
    %v1924 = vunpack.c.l.b16 %v1888
    %v1925 = vpack.c.b16 %v1910, %v1909
    %v1926 = vpack.c.b16 %v1912, %v1911
    %v1927 = vpack.c.b16 %v1914, %v1913
    %v1928 = vpack.c.b16 %v1916, %v1915
    %v1929 = vpack.c.b16 %v1918, %v1917
    %v1930 = vpack.c.b16 %v1920, %v1919
    %v1931 = vpack.c.b16 %v1922, %v1921
    %v1932 = vpack.c.b16 %v1924, %v1923
    %1941 = vmatpush.bf16.msra.mxu0 %v1932
    %1942 = vmatpush.bf16.msra.mxu0 %v1931
    %1943 = vmatpush.bf16.msra.mxu0 %v1930
    %1944 = vmatpush.bf16.msra.mxu0 %v1929
    %1945 = vmatpush.bf16.msra.mxu0 %v1928
    %1946 = vmatpush.bf16.msra.mxu0 %v1927
    %1947 = vmatpush.bf16.msra.mxu0 %v1926
    %1948 = vmatpush.bf16.msra.mxu0 %v1925
    %1949 = vmatmul.bf16.gmra.mxu0 %v1872
    %v1950 = vpop.f32.mrf.mxu0
    %v1951 = vadd.f32 %v1891, %v1950
    %v1952 = vpop.f32.mrf.mxu0
    %1953 = vdwg.mxu0
    %v1954 = vtanh.pop %v1951
    %v1955 = vmul.f32 %v1954, 2.0
    %1956 = vst [vmem:[#allocation18] sm:$0x3] %v1955
    // Predicated region
    $region86: #{tpu_custom_call.1} parent=1 // pred_check
      _
    $region87: #{tpu_custom_call.1} parent=1 // pred_check_branch
      %1958 = sbr.rel (0) target = $region89
    $region88: #{tpu_custom_call.1} parent=1 // pred_region
      %1960 = vsyncadd [#allocation6], 0
      %s1962 = sshll.u32 [#allocation18], 4
      %s1963 = int_to_ptr.vmem [resolvable:$true] %s1962
      %s1964 = sshll.u32 %s13, 4
      %s1965 = int_to_ptr.hbm [resolvable:$true] %s1964
      %1967 = dma.vmem_to_hbm [thread:$0]  %s1963, 32, %s1965, [#allocation6]
    $region89: #{tpu_custom_call.1} parent=1 // pred_fallthru
      _
    // Predicated region
    $region90: #{tpu_custom_call.1} parent=1 // pred_check
      _
    $region91: #{tpu_custom_call.1} parent=1 // pred_check_branch
      %1969 = sbr.rel (0) target = $region93
    $region92: #{tpu_custom_call.1} parent=1 // pred_region
      %1971 = vsyncadd [#allocation20], 0
      %s1972 = sshll.u32 [#allocation19], 4
      %s1973 = int_to_ptr.vmem [resolvable:$true] %s1972
      %s1974 = sshll.u32 %s14, 4
      %s1975 = int_to_ptr.hbm [resolvable:$true] %s1974
      %1980 = dma.vmem_to_hbm [thread:$0]  %s1973, 256, %s1975, [#allocation20], 128, 128, 8
    $region93: #{tpu_custom_call.1} parent=1 // pred_fallthru
      _
    // Predicated region
    $region94: #{tpu_custom_call.1} parent=1 // pred_check
      _
    $region95: #{tpu_custom_call.1} parent=1 // pred_check_branch
      %1982 = sbr.rel (0) target = $region97
    $region96: #{tpu_custom_call.1} parent=1 // pred_region
      %1984 = dma.done [#allocation6], 32
    $region97: #{tpu_custom_call.1} parent=1 // pred_fallthru
      _
    // Predicated region
    $region98: #{tpu_custom_call.1} parent=1 // pred_check
      _
    $region99: #{tpu_custom_call.1} parent=1 // pred_check_branch
      %1986 = sbr.rel (0) target = $region101
    $region100: #{tpu_custom_call.1} parent=1 // pred_region
      %1988 = dma.done [#allocation20], 256
    $region101: #{tpu_custom_call.1} parent=1 // pred_fallthru
      _
    %1989 = vsyncpa [#allocation5], 1
    %1990 = vsyncpa [#allocation8], 1
    %1991 = vsyncpa [#allocation11], 1
    %1992 = vsyncpa [#allocation14], 1
    %1993 = vsyncpa [#allocation17], 1
    %1994 = vsyncpa [#allocation6], 1
    %1995 = vsyncpa [#allocation20], 1

</llo_original>
